<compile_context>
chip_gen: v7x
topology: tpu7x:2x2x1
jax: 0.10.0
libtpu: 0.0.40
codegen_flags: <defaults>
</compile_context>

<pallas_src>
import math

import jax
import jax.numpy as jnp
from jax.experimental import pallas as pl
from jax.experimental.pallas import tpu as pltpu


def _pma_kernel(q_ref, x_ref, wk_ref, bk_ref, wv_ref, bv_ref, wo_ref, bo_ref, o_ref):
    """One grid step == TB batch elements.

    q_ref : (H, S, hd)  f32, batch-invariant pre-projected seeds (heads split)
    x_ref : (TB, N, D)  input set elements for this batch tile
    wk/wv/wo : (D, D)   projection weights (x @ W layout); wk/bk carry 1/sqrt(D)
    bk/bv/bo : (1, D)   f32 biases
    o_ref : (TB, S, D)  pooled output tile
    """
    TB, N, D = x_ref.shape
    H, S, hd = q_ref.shape
    cdt = wk_ref.dtype  # MXU operand dtype (bf16 on the v6e/v7x path, f32 otherwise)

    # --- K / V projections: one big MXU matmul each, f32 accumulation. ---
    xf = x_ref[...].reshape(TB * N, D).astype(cdt)
    k = jnp.dot(xf, wk_ref[...], preferred_element_type=jnp.float32) + bk_ref[...]
    v = jnp.dot(xf, wv_ref[...], preferred_element_type=jnp.float32) + bv_ref[...]

    # --- Per-head attention, batched over the TB tile (flash-style 3-D dots). ---
    head_outs = []
    for h in range(H):  # static, unrolled
        lo = h * hd
        qh = q_ref[h]                                   # (S, hd) f32
        kh = k[:, lo:lo + hd].reshape(TB, N, hd)        # (TB, N, hd)
        vh = v[:, lo:lo + hd].reshape(TB, N, hd)

        qb = jnp.broadcast_to(qh[None], (TB, S, hd))    # f32 copy reused for residual
        scores = jnp.einsum("bsd,bnd->bsn", qb.astype(cdt), kh.astype(cdt),
                            preferred_element_type=jnp.float32)   # scale folded into k
        scores = scores - jnp.max(scores, axis=-1, keepdims=True)
        p = jnp.exp(scores)
        p = p * pl.reciprocal(jnp.sum(p, axis=-1, keepdims=True), approx=True)
        av = jnp.einsum("bsn,bnd->bsd", p.astype(cdt), vh.astype(cdt),
                        preferred_element_type=jnp.float32)
        head_outs.append(qb + av)                       # per-head residual (torch: Q_ + A V_)

    o = jnp.concatenate(head_outs, axis=-1).reshape(TB * S, D)    # (TB*S, D)

    # --- O = O + relu(fc_o(O))   (ln=False path) ---
    proj = jnp.dot(o.astype(cdt), wo_ref[...], preferred_element_type=jnp.float32) + bo_ref[...]
    o = o + jnp.maximum(proj, 0.0)

    # TODO(synk): for D < 128 a lane-dense (TB, S*D) output layout would avoid masked
    # partial stores; at realistic D (multiple of 128) this store is already dense.
    o_ref[...] = o.reshape(TB, S, D).astype(o_ref.dtype)


def _choose_tb(batch, n, d, itemsize, tile_budget_bytes):
    """Largest batch tile that fits the VMEM budget, preferring >=2 grid steps so
    the parallel batch axis can still shard across both v7x TensorCores."""
    divisors = [t for t in range(1, batch + 1) if batch % t == 0]
    fits = [t for t in divisors if t * n * d * itemsize <= tile_budget_bytes]
    if not fits:
        return 1
    multi = [t for t in fits if batch // t >= 2]
    return max(multi) if multi else max(fits)


def pma_forward(x, seeds, params, *, num_heads,
                compute_dtype=jnp.bfloat16,
                tile_budget_bytes=2 << 20):
    """x: (B, N, D); seeds: (num_seeds, D); params: (D, D) weights and (1, D) biases."""
    B, N, D = x.shape
    S = seeds.shape[0]
    assert D % num_heads == 0, "dim must be divisible by num_heads"
    hd = D // num_heads
    f32 = jnp.float32

    # Hoisted, batch-invariant Q projection (computed once, outside the grid),
    # pre-split into per-head layout (H, S, hd).
    q = jnp.dot(seeds.astype(f32), params["wq"].astype(f32)) + params["bq"].astype(f32)
    q_heads = q.reshape(S, num_heads, hd).transpose(1, 0, 2)

    # Fold the 1/sqrt(dim_V) score scale into the K projection (K only feeds scores).
    scale = 1.0 / math.sqrt(D)
    wk = (params["wk"].astype(f32) * scale).astype(compute_dtype)
    bk = params["bk"].astype(f32) * scale
    wv = params["wv"].astype(compute_dtype)
    bv = params["bv"].astype(f32)
    wo = params["wo"].astype(compute_dtype)
    bo = params["bo"].astype(f32)

    tb = _choose_tb(B, N, D, x.dtype.itemsize, tile_budget_bytes)
    grid = (B // tb,)

    const2d = lambda shape: pl.BlockSpec(shape, lambda b: (0, 0))

    w_bytes = jnp.dtype(compute_dtype).itemsize
    cost = pl.CostEstimate(
        flops=int(B * (4 * N * D * D + 4 * S * N * D + 2 * S * D * D)),
        transcendentals=int(B * num_heads * S * N),
        bytes_accessed=int(B * N * D * x.dtype.itemsize
                           + B * S * D * x.dtype.itemsize
                           + 3 * D * D * w_bytes
                           + num_heads * S * hd * 4 + 3 * D * 4),
    )

    # NOTE(v7x): the weight specs below are grid-invariant; on the 64 MiB-VMEM part
    # with large D they could be single-buffered via pipeline_mode=pl.Buffered(1).
    return pl.pallas_call(
        _pma_kernel,
        out_shape=jax.ShapeDtypeStruct((B, S, D), x.dtype),
        grid_spec=pltpu.PrefetchScalarGridSpec(
            num_scalar_prefetch=0,
            grid=grid,
            in_specs=[
                pl.BlockSpec((num_heads, S, hd), lambda b: (0, 0, 0)),  # q_heads
                pl.BlockSpec((tb, N, D), lambda b: (b, 0, 0)),          # x batch tile
                const2d((D, D)), const2d((1, D)),                       # wk, bk (pre-scaled)
                const2d((D, D)), const2d((1, D)),                       # wv, bv
                const2d((D, D)), const2d((1, D)),                       # wo, bo
            ],
            out_specs=pl.BlockSpec((tb, S, D), lambda b: (b, 0, 0)),
        ),
        compiler_params=pltpu.CompilerParams(
            dimension_semantics=("parallel",),
            vmem_limit_bytes=64 * 1024 * 1024,
        ),
        cost_estimate=cost,
    )(q_heads, x, wk, bk, wv, bv, wo, bo)


def _xavier_uniform(key, shape):
    fan_in, fan_out = shape[-1], shape[-2]
    limit = math.sqrt(6.0 / (fan_in + fan_out))
    return jax.random.uniform(key, shape, jnp.float32, -limit, limit)


def make_params(key, dim, num_seeds):
    """Deterministic parameter init matching PMA.__init__ / MAB.__init__ shapes."""
    keys = jax.random.split(key, 10)

    def linear(kw, kb):
        w = _xavier_uniform(kw, (dim, dim))          # torch (out, in); square so T same shape
        b_lim = 1.0 / math.sqrt(dim)
        b = jax.random.uniform(kb, (1, dim), jnp.float32, -b_lim, b_lim)
        return w.T, b

    wq, bq = linear(keys[0], keys[1])
    wk, bk = linear(keys[2], keys[3])
    wv, bv = linear(keys[4], keys[5])
    wo, bo = linear(keys[6], keys[7])
    seeds = _xavier_uniform(keys[8], (num_seeds, dim))   # PMA.S (leading 1 squeezed)
    return seeds, dict(wq=wq, bq=bq, wk=wk, bk=bk, wv=wv, bv=bv, wo=wo, bo=bo)


def pma_reference(x, seeds, params, *, num_heads):
    """Pure-JAX reference mirroring the torch code exactly (ln=False path)."""
    B, N, D = x.shape
    q = seeds[None] @ params["wq"] + params["bq"]           # (1, S, D)
    q = jnp.broadcast_to(q, (B,) + q.shape[1:])
    k = x @ params["wk"] + params["bk"]
    v = x @ params["wv"] + params["bv"]
    ds = D // num_heads
    split = lambda t: jnp.concatenate(jnp.split(t, num_heads, axis=2), axis=0)
    q_, k_, v_ = split(q), split(k), split(v)
    a = jax.nn.softmax(jnp.einsum("bsd,bnd->bsn", q_, k_) / math.sqrt(D), axis=2)
    o = q_ + jnp.einsum("bsn,bnd->bsd", a, v_)
    o = jnp.concatenate(jnp.split(o, num_heads, axis=0), axis=2)   # (B, S, D)
    o = o + jax.nn.relu(o @ params["wo"] + params["bo"])
    return o


if __name__ == "__main__":
    B, N, D = 2, 8, 32
    num_heads, num_seeds = 4, 4

    key = jax.random.PRNGKey(0)
    kx, kp = jax.random.split(key)
    x = jax.random.normal(kx, (B, N, D), jnp.float32)
    seeds, params = make_params(kp, D, num_seeds)

    ref = pma_reference(x, seeds, params, num_heads=num_heads)

    # Full-precision MXU path: tight check against the pure-JAX reference
    # (only the approx-reciprocal softmax denominator differs).
    out_f32 = pma_forward(x, seeds, params, num_heads=num_heads,
                          compute_dtype=jnp.float32)
    out_f32 = jax.block_until_ready(out_f32)
    assert out_f32.shape == (B, num_seeds, D)
    assert jnp.allclose(out_f32, ref, atol=2e-3, rtol=2e-3), "f32 path mismatch vs reference"

    # bf16-operand MXU path (v6e/v7x recommendation): looser, bf16-appropriate tolerance.
    out_bf16 = pma_forward(x, seeds, params, num_heads=num_heads,
                           compute_dtype=jnp.bfloat16)
    out_bf16 = jax.block_until_ready(out_bf16)
    assert out_bf16.shape == (B, num_seeds, D)
    assert jnp.allclose(out_bf16, ref, atol=3e-2, rtol=3e-2), "bf16 path mismatch vs reference"

    print("KERNEL_OK")
</pallas_src>

<mosaic_0001>
module attributes {stable_mosaic.version = 11 : i64} {
  func.func @_pma_kernel(%arg0: i32, %arg1: memref<4x4x8xf32, #tpu.memory_space<vmem>>, %arg2: memref<1x8x32xf32, #tpu.memory_space<vmem>>, %arg3: memref<32x32xf32, #tpu.memory_space<vmem>>, %arg4: memref<1x32xf32, #tpu.memory_space<vmem>>, %arg5: memref<32x32xf32, #tpu.memory_space<vmem>>, %arg6: memref<1x32xf32, #tpu.memory_space<vmem>>, %arg7: memref<32x32xf32, #tpu.memory_space<vmem>>, %arg8: memref<1x32xf32, #tpu.memory_space<vmem>>, %arg9: memref<1x4x32xf32, #tpu.memory_space<vmem>>) attributes {dimension_semantics = [#tpu.dimension_semantics<parallel>], iteration_bounds = array<i64: 2>, scalar_prefetch = 0 : i64, scratch_operands = 0 : i64, tpu.core_type = #tpu.core_type<tc>, window_params = [{pipeline_mode = #tpu.pipeline_mode<synchronous>, transform_indices = @transform_0, window_bounds = array<i64: 4, 4, 8>}, {transform_indices = @transform_1, window_bounds = array<i64: 1, 8, 32>}, {pipeline_mode = #tpu.pipeline_mode<synchronous>, transform_indices = @transform_2, window_bounds = array<i64: 32, 32>}, {pipeline_mode = #tpu.pipeline_mode<synchronous>, transform_indices = @transform_3, window_bounds = array<i64: 1, 32>}, {pipeline_mode = #tpu.pipeline_mode<synchronous>, transform_indices = @transform_4, window_bounds = array<i64: 32, 32>}, {pipeline_mode = #tpu.pipeline_mode<synchronous>, transform_indices = @transform_5, window_bounds = array<i64: 1, 32>}, {pipeline_mode = #tpu.pipeline_mode<synchronous>, transform_indices = @transform_6, window_bounds = array<i64: 32, 32>}, {pipeline_mode = #tpu.pipeline_mode<synchronous>, transform_indices = @transform_7, window_bounds = array<i64: 1, 32>}, {transform_indices = @transform_8, window_bounds = array<i64: 1, 4, 32>}]} {
    %c0 = arith.constant 0 : index
    %c0_0 = arith.constant 0 : index
    %c0_1 = arith.constant 0 : index
    %0 = vector.load %arg2[%c0, %c0_0, %c0_1] : memref<1x8x32xf32, #tpu.memory_space<vmem>>, vector<1x8x32xf32>
    %1 = vector.shape_cast %0 : vector<1x8x32xf32> to vector<8x32xf32>
    %c0_2 = arith.constant 0 : index
    %c0_3 = arith.constant 0 : index
    %2 = vector.load %arg3[%c0_2, %c0_3] : memref<32x32xf32, #tpu.memory_space<vmem>>, vector<32x32xf32>
    %cst = arith.constant dense<0.000000e+00> : vector<8x32xf32>
    %3 = tpu.matmul %1, %2, %cst {dimension_numbers = #tpu.dot_dimension_numbers<[1], [0], [0], [1], [0, 0, 1, 1], [], []>} : vector<8x32xf32>, vector<32x32xf32>, vector<8x32xf32> -> vector<8x32xf32>
    %c0_4 = arith.constant 0 : index
    %c0_5 = arith.constant 0 : index
    %4 = vector.load %arg4[%c0_4, %c0_5] : memref<1x32xf32, #tpu.memory_space<vmem>>, vector<1x32xf32>
    %5 = vector.broadcast %4 : vector<1x32xf32> to vector<8x32xf32>
    %6 = arith.addf %3, %5 : vector<8x32xf32>
    %c0_6 = arith.constant 0 : index
    %c0_7 = arith.constant 0 : index
    %7 = vector.load %arg5[%c0_6, %c0_7] : memref<32x32xf32, #tpu.memory_space<vmem>>, vector<32x32xf32>
    %cst_8 = arith.constant dense<0.000000e+00> : vector<8x32xf32>
    %8 = tpu.matmul %1, %7, %cst_8 {dimension_numbers = #tpu.dot_dimension_numbers<[1], [0], [0], [1], [0, 0, 1, 1], [], []>} : vector<8x32xf32>, vector<32x32xf32>, vector<8x32xf32> -> vector<8x32xf32>
    %c0_9 = arith.constant 0 : index
    %c0_10 = arith.constant 0 : index
    %9 = vector.load %arg6[%c0_9, %c0_10] : memref<1x32xf32, #tpu.memory_space<vmem>>, vector<1x32xf32>
    %10 = vector.broadcast %9 : vector<1x32xf32> to vector<8x32xf32>
    %11 = arith.addf %8, %10 : vector<8x32xf32>
    %c0_11 = arith.constant 0 : index
    %c0_12 = arith.constant 0 : index
    %c0_13 = arith.constant 0 : index
    %12 = vector.load %arg1[%c0_11, %c0_12, %c0_13] : memref<4x4x8xf32, #tpu.memory_space<vmem>>, vector<1x4x8xf32>
    %13 = vector.shape_cast %12 : vector<1x4x8xf32> to vector<4x8xf32>
    %14 = vector.extract_strided_slice %6 {offsets = [0, 0], sizes = [8, 8], strides = [1, 1]} : vector<8x32xf32> to vector<8x8xf32>
    %15 = vector.shape_cast %14 : vector<8x8xf32> to vector<1x8x8xf32>
    %16 = vector.extract_strided_slice %11 {offsets = [0, 0], sizes = [8, 8], strides = [1, 1]} : vector<8x32xf32> to vector<8x8xf32>
    %17 = vector.shape_cast %16 : vector<8x8xf32> to vector<1x8x8xf32>
    %18 = vector.shape_cast %13 : vector<4x8xf32> to vector<1x4x8xf32>
    "tpu.trace_start"() <{level = 10 : i32, message = "bsd,bnd->bsn"}> : () -> ()
    %cst_14 = arith.constant dense<0.000000e+00> : vector<1x4x8xf32>
    %19 = tpu.matmul %18, %15, %cst_14 {dimension_numbers = #tpu.dot_dimension_numbers<[2], [2], [1], [1], [0, 0, 0, 1, 1, 1], [0], [0]>} : vector<1x4x8xf32>, vector<1x8x8xf32>, vector<1x4x8xf32> -> vector<1x4x8xf32>
    "tpu.trace_stop"() : () -> ()
    %cst_15 = arith.constant dense<0xFF800000> : vector<1x4xf32>
    %20 = vector.multi_reduction <maximumf>, %19, %cst_15 [2] : vector<1x4x8xf32> to vector<1x4xf32>
    %21 = vector.shape_cast %20 : vector<1x4xf32> to vector<1x4x1xf32>
    %22 = vector.broadcast %21 : vector<1x4x1xf32> to vector<1x4x8xf32>
    %23 = arith.subf %19, %22 : vector<1x4x8xf32>
    %24 = math.exp %23 : vector<1x4x8xf32>
    %cst_16 = arith.constant dense<0.000000e+00> : vector<1x4xf32>
    %25 = vector.multi_reduction <add>, %24, %cst_16 [2] : vector<1x4x8xf32> to vector<1x4xf32>
    %26 = vector.shape_cast %25 : vector<1x4xf32> to vector<1x4x1xf32>
    %27 = tpu.reciprocal %26 {approx = true} : vector<1x4x1xf32> -> vector<1x4x1xf32>
    %28 = vector.broadcast %27 : vector<1x4x1xf32> to vector<1x4x8xf32>
    %29 = arith.mulf %24, %28 : vector<1x4x8xf32>
    "tpu.trace_start"() <{level = 10 : i32, message = "bsn,bnd->bsd"}> : () -> ()
    %cst_17 = arith.constant dense<0.000000e+00> : vector<1x4x8xf32>
    %30 = tpu.matmul %29, %17, %cst_17 {dimension_numbers = #tpu.dot_dimension_numbers<[2], [1], [1], [2], [0, 0, 0, 1, 1, 2], [0], [0]>} : vector<1x4x8xf32>, vector<1x8x8xf32>, vector<1x4x8xf32> -> vector<1x4x8xf32>
    "tpu.trace_stop"() : () -> ()
    %31 = arith.addf %18, %30 : vector<1x4x8xf32>
    %c1 = arith.constant 1 : index
    %c0_18 = arith.constant 0 : index
    %c0_19 = arith.constant 0 : index
    %32 = vector.load %arg1[%c1, %c0_18, %c0_19] : memref<4x4x8xf32, #tpu.memory_space<vmem>>, vector<1x4x8xf32>
    %33 = vector.shape_cast %32 : vector<1x4x8xf32> to vector<4x8xf32>
    %34 = vector.extract_strided_slice %6 {offsets = [0, 8], sizes = [8, 8], strides = [1, 1]} : vector<8x32xf32> to vector<8x8xf32>
    %35 = vector.shape_cast %34 : vector<8x8xf32> to vector<1x8x8xf32>
    %36 = vector.extract_strided_slice %11 {offsets = [0, 8], sizes = [8, 8], strides = [1, 1]} : vector<8x32xf32> to vector<8x8xf32>
    %37 = vector.shape_cast %36 : vector<8x8xf32> to vector<1x8x8xf32>
    %38 = vector.shape_cast %33 : vector<4x8xf32> to vector<1x4x8xf32>
    "tpu.trace_start"() <{level = 10 : i32, message = "bsd,bnd->bsn"}> : () -> ()
    %cst_20 = arith.constant dense<0.000000e+00> : vector<1x4x8xf32>
    %39 = tpu.matmul %38, %35, %cst_20 {dimension_numbers = #tpu.dot_dimension_numbers<[2], [2], [1], [1], [0, 0, 0, 1, 1, 1], [0], [0]>} : vector<1x4x8xf32>, vector<1x8x8xf32>, vector<1x4x8xf32> -> vector<1x4x8xf32>
    "tpu.trace_stop"() : () -> ()
    %cst_21 = arith.constant dense<0xFF800000> : vector<1x4xf32>
    %40 = vector.multi_reduction <maximumf>, %39, %cst_21 [2] : vector<1x4x8xf32> to vector<1x4xf32>
    %41 = vector.shape_cast %40 : vector<1x4xf32> to vector<1x4x1xf32>
    %42 = vector.broadcast %41 : vector<1x4x1xf32> to vector<1x4x8xf32>
    %43 = arith.subf %39, %42 : vector<1x4x8xf32>
    %44 = math.exp %43 : vector<1x4x8xf32>
    %cst_22 = arith.constant dense<0.000000e+00> : vector<1x4xf32>
    %45 = vector.multi_reduction <add>, %44, %cst_22 [2] : vector<1x4x8xf32> to vector<1x4xf32>
    %46 = vector.shape_cast %45 : vector<1x4xf32> to vector<1x4x1xf32>
    %47 = tpu.reciprocal %46 {approx = true} : vector<1x4x1xf32> -> vector<1x4x1xf32>
    %48 = vector.broadcast %47 : vector<1x4x1xf32> to vector<1x4x8xf32>
    %49 = arith.mulf %44, %48 : vector<1x4x8xf32>
    "tpu.trace_start"() <{level = 10 : i32, message = "bsn,bnd->bsd"}> : () -> ()
    %cst_23 = arith.constant dense<0.000000e+00> : vector<1x4x8xf32>
    %50 = tpu.matmul %49, %37, %cst_23 {dimension_numbers = #tpu.dot_dimension_numbers<[2], [1], [1], [2], [0, 0, 0, 1, 1, 2], [0], [0]>} : vector<1x4x8xf32>, vector<1x8x8xf32>, vector<1x4x8xf32> -> vector<1x4x8xf32>
    "tpu.trace_stop"() : () -> ()
    %51 = arith.addf %38, %50 : vector<1x4x8xf32>
    %c2 = arith.constant 2 : index
    %c0_24 = arith.constant 0 : index
    %c0_25 = arith.constant 0 : index
    %52 = vector.load %arg1[%c2, %c0_24, %c0_25] : memref<4x4x8xf32, #tpu.memory_space<vmem>>, vector<1x4x8xf32>
    %53 = vector.shape_cast %52 : vector<1x4x8xf32> to vector<4x8xf32>
    %54 = vector.extract_strided_slice %6 {offsets = [0, 16], sizes = [8, 8], strides = [1, 1]} : vector<8x32xf32> to vector<8x8xf32>
    %55 = vector.shape_cast %54 : vector<8x8xf32> to vector<1x8x8xf32>
    %56 = vector.extract_strided_slice %11 {offsets = [0, 16], sizes = [8, 8], strides = [1, 1]} : vector<8x32xf32> to vector<8x8xf32>
    %57 = vector.shape_cast %56 : vector<8x8xf32> to vector<1x8x8xf32>
    %58 = vector.shape_cast %53 : vector<4x8xf32> to vector<1x4x8xf32>
    "tpu.trace_start"() <{level = 10 : i32, message = "bsd,bnd->bsn"}> : () -> ()
    %cst_26 = arith.constant dense<0.000000e+00> : vector<1x4x8xf32>
    %59 = tpu.matmul %58, %55, %cst_26 {dimension_numbers = #tpu.dot_dimension_numbers<[2], [2], [1], [1], [0, 0, 0, 1, 1, 1], [0], [0]>} : vector<1x4x8xf32>, vector<1x8x8xf32>, vector<1x4x8xf32> -> vector<1x4x8xf32>
    "tpu.trace_stop"() : () -> ()
    %cst_27 = arith.constant dense<0xFF800000> : vector<1x4xf32>
    %60 = vector.multi_reduction <maximumf>, %59, %cst_27 [2] : vector<1x4x8xf32> to vector<1x4xf32>
    %61 = vector.shape_cast %60 : vector<1x4xf32> to vector<1x4x1xf32>
    %62 = vector.broadcast %61 : vector<1x4x1xf32> to vector<1x4x8xf32>
    %63 = arith.subf %59, %62 : vector<1x4x8xf32>
    %64 = math.exp %63 : vector<1x4x8xf32>
    %cst_28 = arith.constant dense<0.000000e+00> : vector<1x4xf32>
    %65 = vector.multi_reduction <add>, %64, %cst_28 [2] : vector<1x4x8xf32> to vector<1x4xf32>
    %66 = vector.shape_cast %65 : vector<1x4xf32> to vector<1x4x1xf32>
    %67 = tpu.reciprocal %66 {approx = true} : vector<1x4x1xf32> -> vector<1x4x1xf32>
    %68 = vector.broadcast %67 : vector<1x4x1xf32> to vector<1x4x8xf32>
    %69 = arith.mulf %64, %68 : vector<1x4x8xf32>
    "tpu.trace_start"() <{level = 10 : i32, message = "bsn,bnd->bsd"}> : () -> ()
    %cst_29 = arith.constant dense<0.000000e+00> : vector<1x4x8xf32>
    %70 = tpu.matmul %69, %57, %cst_29 {dimension_numbers = #tpu.dot_dimension_numbers<[2], [1], [1], [2], [0, 0, 0, 1, 1, 2], [0], [0]>} : vector<1x4x8xf32>, vector<1x8x8xf32>, vector<1x4x8xf32> -> vector<1x4x8xf32>
    "tpu.trace_stop"() : () -> ()
    %71 = arith.addf %58, %70 : vector<1x4x8xf32>
    %c3 = arith.constant 3 : index
    %c0_30 = arith.constant 0 : index
    %c0_31 = arith.constant 0 : index
    %72 = vector.load %arg1[%c3, %c0_30, %c0_31] : memref<4x4x8xf32, #tpu.memory_space<vmem>>, vector<1x4x8xf32>
    %73 = vector.shape_cast %72 : vector<1x4x8xf32> to vector<4x8xf32>
    %74 = vector.extract_strided_slice %6 {offsets = [0, 24], sizes = [8, 8], strides = [1, 1]} : vector<8x32xf32> to vector<8x8xf32>
    %75 = vector.shape_cast %74 : vector<8x8xf32> to vector<1x8x8xf32>
    %76 = vector.extract_strided_slice %11 {offsets = [0, 24], sizes = [8, 8], strides = [1, 1]} : vector<8x32xf32> to vector<8x8xf32>
    %77 = vector.shape_cast %76 : vector<8x8xf32> to vector<1x8x8xf32>
    %78 = vector.shape_cast %73 : vector<4x8xf32> to vector<1x4x8xf32>
    "tpu.trace_start"() <{level = 10 : i32, message = "bsd,bnd->bsn"}> : () -> ()
    %cst_32 = arith.constant dense<0.000000e+00> : vector<1x4x8xf32>
    %79 = tpu.matmul %78, %75, %cst_32 {dimension_numbers = #tpu.dot_dimension_numbers<[2], [2], [1], [1], [0, 0, 0, 1, 1, 1], [0], [0]>} : vector<1x4x8xf32>, vector<1x8x8xf32>, vector<1x4x8xf32> -> vector<1x4x8xf32>
    "tpu.trace_stop"() : () -> ()
    %cst_33 = arith.constant dense<0xFF800000> : vector<1x4xf32>
    %80 = vector.multi_reduction <maximumf>, %79, %cst_33 [2] : vector<1x4x8xf32> to vector<1x4xf32>
    %81 = vector.shape_cast %80 : vector<1x4xf32> to vector<1x4x1xf32>
    %82 = vector.broadcast %81 : vector<1x4x1xf32> to vector<1x4x8xf32>
    %83 = arith.subf %79, %82 : vector<1x4x8xf32>
    %84 = math.exp %83 : vector<1x4x8xf32>
    %cst_34 = arith.constant dense<0.000000e+00> : vector<1x4xf32>
    %85 = vector.multi_reduction <add>, %84, %cst_34 [2] : vector<1x4x8xf32> to vector<1x4xf32>
    %86 = vector.shape_cast %85 : vector<1x4xf32> to vector<1x4x1xf32>
    %87 = tpu.reciprocal %86 {approx = true} : vector<1x4x1xf32> -> vector<1x4x1xf32>
    %88 = vector.broadcast %87 : vector<1x4x1xf32> to vector<1x4x8xf32>
    %89 = arith.mulf %84, %88 : vector<1x4x8xf32>
    "tpu.trace_start"() <{level = 10 : i32, message = "bsn,bnd->bsd"}> : () -> ()
    %cst_35 = arith.constant dense<0.000000e+00> : vector<1x4x8xf32>
    %90 = tpu.matmul %89, %77, %cst_35 {dimension_numbers = #tpu.dot_dimension_numbers<[2], [1], [1], [2], [0, 0, 0, 1, 1, 2], [0], [0]>} : vector<1x4x8xf32>, vector<1x8x8xf32>, vector<1x4x8xf32> -> vector<1x4x8xf32>
    "tpu.trace_stop"() : () -> ()
    %91 = arith.addf %78, %90 : vector<1x4x8xf32>
    %92 = tpu.concatenate %31, %51, %71, %91 in 2 : vector<1x4x8xf32>, vector<1x4x8xf32>, vector<1x4x8xf32>, vector<1x4x8xf32> -> vector<1x4x32xf32>
    %93 = vector.shape_cast %92 : vector<1x4x32xf32> to vector<4x32xf32>
    %c0_36 = arith.constant 0 : index
    %c0_37 = arith.constant 0 : index
    %94 = vector.load %arg7[%c0_36, %c0_37] : memref<32x32xf32, #tpu.memory_space<vmem>>, vector<32x32xf32>
    %cst_38 = arith.constant dense<0.000000e+00> : vector<4x32xf32>
    %95 = tpu.matmul %93, %94, %cst_38 {dimension_numbers = #tpu.dot_dimension_numbers<[1], [0], [0], [1], [0, 0, 1, 1], [], []>} : vector<4x32xf32>, vector<32x32xf32>, vector<4x32xf32> -> vector<4x32xf32>
    %c0_39 = arith.constant 0 : index
    %c0_40 = arith.constant 0 : index
    %96 = vector.load %arg8[%c0_39, %c0_40] : memref<1x32xf32, #tpu.memory_space<vmem>>, vector<1x32xf32>
    %97 = vector.broadcast %96 : vector<1x32xf32> to vector<4x32xf32>
    %98 = arith.addf %95, %97 : vector<4x32xf32>
    %cst_41 = arith.constant 0.000000e+00 : f32
    %99 = vector.broadcast %cst_41 : f32 to vector<4x32xf32>
    %100 = arith.maximumf %98, %99 : vector<4x32xf32>
    %101 = arith.addf %93, %100 : vector<4x32xf32>
    %102 = vector.shape_cast %101 : vector<4x32xf32> to vector<1x4x32xf32>
    %c0_42 = arith.constant 0 : index
    %c0_43 = arith.constant 0 : index
    %c0_44 = arith.constant 0 : index
    %103 = vector.load %arg9[%c0_42, %c0_43, %c0_44] : memref<1x4x32xf32, #tpu.memory_space<vmem>>, vector<1x4x32xf32>
    tpu.vector_store %arg9[%c0_42, %c0_43, %c0_44], %102 {strides = array<i32>} : memref<1x4x32xf32, #tpu.memory_space<vmem>>, vector<1x4x32xf32>,
    return
  }
  func.func @transform_0(%arg0: i32) -> (i32, i32, i32) {
    %c0_i32 = arith.constant 0 : i32
    %c0_i32_0 = arith.constant 0 : i32
    %c0_i32_1 = arith.constant 0 : i32
    %c0_i32_2 = arith.constant 0 : i32
    return %c0_i32, %c0_i32_0, %c0_i32_1 : i32, i32, i32
  }
  func.func @transform_1(%arg0: i32) -> (i32, i32, i32) {
    %c0_i32 = arith.constant 0 : i32
    %c0_i32_0 = arith.constant 0 : i32
    %c0_i32_1 = arith.constant 0 : i32
    return %arg0, %c0_i32, %c0_i32_0 : i32, i32, i32
  }
  func.func @transform_2(%arg0: i32) -> (i32, i32) {
    %c0_i32 = arith.constant 0 : i32
    %c0_i32_0 = arith.constant 0 : i32
    %c0_i32_1 = arith.constant 0 : i32
    return %c0_i32, %c0_i32_0 : i32, i32
  }
  func.func @transform_3(%arg0: i32) -> (i32, i32) {
    %c0_i32 = arith.constant 0 : i32
    %c0_i32_0 = arith.constant 0 : i32
    %c0_i32_1 = arith.constant 0 : i32
    return %c0_i32, %c0_i32_0 : i32, i32
  }
  func.func @transform_4(%arg0: i32) -> (i32, i32) {
    %c0_i32 = arith.constant 0 : i32
    %c0_i32_0 = arith.constant 0 : i32
    %c0_i32_1 = arith.constant 0 : i32
    return %c0_i32, %c0_i32_0 : i32, i32
  }
  func.func @transform_5(%arg0: i32) -> (i32, i32) {
    %c0_i32 = arith.constant 0 : i32
    %c0_i32_0 = arith.constant 0 : i32
    %c0_i32_1 = arith.constant 0 : i32
    return %c0_i32, %c0_i32_0 : i32, i32
  }
  func.func @transform_6(%arg0: i32) -> (i32, i32) {
    %c0_i32 = arith.constant 0 : i32
    %c0_i32_0 = arith.constant 0 : i32
    %c0_i32_1 = arith.constant 0 : i32
    return %c0_i32, %c0_i32_0 : i32, i32
  }
  func.func @transform_7(%arg0: i32) -> (i32, i32) {
    %c0_i32 = arith.constant 0 : i32
    %c0_i32_0 = arith.constant 0 : i32
    %c0_i32_1 = arith.constant 0 : i32
    return %c0_i32, %c0_i32_0 : i32, i32
  }
  func.func @transform_8(%arg0: i32) -> (i32, i32, i32) {
    %c0_i32 = arith.constant 0 : i32
    %c0_i32_0 = arith.constant 0 : i32
    %c0_i32_1 = arith.constant 0 : i32
    return %arg0, %c0_i32, %c0_i32_0 : i32, i32, i32
  }
}

</mosaic_0001>

<llo_original>
// kernel: tpu_custom_call.1
$region0: #{tpu_custom_call.1}
  #allocation0 [shape = 'u32[]', space=smem, size = 0x4, offset = 0x4, fixed_abs, tag = 'smem constant byte address 0x4 - core index']
  #allocation1 [shape = 'u32[144,128]{1,0:T(1,128)}', space=vmem, size = 0x12000, scoped, tag = 'internal scratch']
  %s0 = inlined_call_operand.hbm [shape: f32[4,4,8], index: 0, kind: input, shape index: {}]
  %s1 = inlined_call_operand.hbm [shape: f32[2,8,32], index: 1, kind: input, shape index: {}]
  %s2 = inlined_call_operand.hbm [shape: f32[32,32], index: 2, kind: input, shape index: {}]
  %s3 = inlined_call_operand.hbm [shape: f32[1,32], index: 3, kind: input, shape index: {}]
  %s4 = inlined_call_operand.hbm [shape: f32[32,32], index: 4, kind: input, shape index: {}]
  %s5 = inlined_call_operand.hbm [shape: f32[1,32], index: 5, kind: input, shape index: {}]
  %s6 = inlined_call_operand.hbm [shape: f32[32,32], index: 6, kind: input, shape index: {}]
  %s7 = inlined_call_operand.hbm [shape: f32[1,32], index: 7, kind: input, shape index: {}]
  %s8 = inlined_call_operand.hbm [shape: f32[2,4,32], index: 8, kind: output, shape index: {}]
  %s9 = sld [smem:[#allocation0]]
  $region97: #{tpu_custom_call.1} parent=0
    _
  %s11 = ssub.s32 1, %s9
  %s12 = scalar_select 0, %s11, %s9
  $region1: #{tpu_custom_call.1} parent=0
    #allocation2 [shape = 'u8[8192]{0}', space=vmem, size = 0x2000, scoped, tag = 'input window, operand 0, single buffered']
    #allocation3 [shape = 's32[2]{0}', space=sflag, size = 0x8, scoped, tag = 'scoped memory for tpu_custom_call.1']
    #allocation4 [shape = 's32[2]{0}', space=sflag, size = 0x8, scoped, tag = 'scoped memory for tpu_custom_call.1']
    #allocation5 [shape = 'u8[8192]{0}', space=vmem, size = 0x2000, scoped, tag = 'input window, operand 1']
    #allocation6 [shape = 's32[2]{0}', space=sflag, size = 0x8, scoped, tag = 'scoped memory for tpu_custom_call.1']
    #allocation7 [shape = 'u8[16384]{0}', space=vmem, size = 0x4000, scoped, tag = 'input window, operand 2, single buffered']
    #allocation8 [shape = 'u8[512]{0}', space=vmem, size = 0x400, scoped, tag = 'input window, operand 3, single buffered']
    #allocation9 [shape = 's32[1]{0}', space=sflag, size = 0x4, scoped, tag = 'scoped memory for tpu_custom_call.1']
    #allocation10 [shape = 'u8[16384]{0}', space=vmem, size = 0x4000, scoped, tag = 'input window, operand 4, single buffered']
    #allocation11 [shape = 'u8[512]{0}', space=vmem, size = 0x400, scoped, tag = 'input window, operand 5, single buffered']
    #allocation12 [shape = 's32[1]{0}', space=sflag, size = 0x4, scoped, tag = 'scoped memory for tpu_custom_call.1']
    #allocation13 [shape = 'u8[16384]{0}', space=vmem, size = 0x4000, scoped, tag = 'input window, operand 6, single buffered']
    #allocation14 [shape = 'u8[512]{0}', space=vmem, size = 0x400, scoped, tag = 'input window, operand 7, single buffered']
    #allocation15 [shape = 's32[1]{0}', space=sflag, size = 0x4, scoped, tag = 'scoped memory for tpu_custom_call.1']
    #allocation16 [shape = 'u8[4096]{0}', space=vmem, size = 0x1000, scoped, tag = 'output window, operand 0']
    %13 = vsyncpa [#allocation3], 0
    %14 = vsyncpa [#allocation6], 0
    %s15 = scalar_lea.sflag [#allocation6], 1
    %16 = vsyncpa %s15, 0
    %17 = vsyncpa [#allocation9], 0
    %18 = vsyncpa [#allocation12], 0
    %19 = vsyncpa [#allocation15], 0
    %20 = vsyncpa [#allocation4], 0
    %s21 = scalar_lea.sflag [#allocation4], 1
    %22 = vsyncpa %s21, 0
    loop: start=0, step=1, limit=4
    $region2: #{tpu_custom_call.1} parent=1 // loop_pre_header
      _
    $region3: #{tpu_custom_call.1} parent=1 // loop_header
      %s24 = sphi 0, %s28
      %p25 = scmp.ge.s32.totalorder %s24, 4
      %s32 = sphi 0, %s32
      %s34 = sphi 0, %s32
      %s35 = sphi 0, %s34
      %s49 = sphi 0, %s35
      %s55 = sphi 0, %s57
      %s58 = sphi 0, %s55
      %s59 = sphi 0, %s58
      %s75 = sphi 0, %s59
      %s79 = sphi 0, %s79
      %s81 = sphi 0, %s79
      %s82 = sphi 0, %s81
      %s96 = sphi 0, %s82
      %s100 = sphi 0, %s100
      %s102 = sphi 0, %s100
      %s103 = sphi 0, %s102
      %s117 = sphi 0, %s103
      %s121 = sphi 0, %s121
      %s123 = sphi 0, %s121
      %s124 = sphi 0, %s123
      %s138 = sphi 0, %s124
      %s142 = sphi 0, %s142
      %s144 = sphi 0, %s142
      %s145 = sphi 0, %s144
      %s159 = sphi 0, %s145
      %s163 = sphi 0, %s163
      %s165 = sphi 0, %s163
      %s166 = sphi 0, %s165
      %s180 = sphi 0, %s166
      %s184 = sphi 0, %s184
      %s186 = sphi 0, %s184
      %s187 = sphi 0, %s186
      %s201 = sphi 0, %s187
      %s207 = sphi 0, %s209
      %s210 = sphi 0, %s207
      %s211 = sphi 0, %s210
      %s227 = sphi 0, %s211
    $region4: #{tpu_custom_call.1} parent=1 // loop_header_branch
      %27 = sbr.rel (%p25) target = $region8
    $region5: #{tpu_custom_call.1} parent=1 // loop_body
      %s29 = ssub.s32 %s24, 1
      %s30 = ssub.s32 %s24, 2
      %s31 = sadd.s32 %s24, 1
      %s33 = sadd.s32 %s32, 1
      %p36 = scmp.eq.s32.totalorder %s24, 1
      %p37 = scmp.ne.s32.totalorder %s32, %s34
      %p38 = scmp.eq.s32.totalorder %s24, 0
      %p39 = por %p37, %p38
      %p40 = scmp.ne.s32.totalorder %s32, %s34
      %p41 = scmp.eq.s32.totalorder %s29, 1
      %p42 = por %p40, %p41
      %p43 = scmp.ne.s32.totalorder %s34, %s35
      %p44 = scmp.eq.s32.totalorder %s29, 0
      %p45 = por %p43, %p44
      %p46 = scmp.ne.s32.totalorder %s34, %s35
      %p47 = scmp.eq.s32.totalorder %s30, 1
      %p48 = por %p46, %p47
      %p50 = scmp.ne.s32.totalorder %s35, %s49
      %p51 = scmp.eq.s32.totalorder %s30, 0
      %p52 = por %p50, %p51
      %s53 = ssub.s32 %s24, %s31
      %p54 = scmp.eq.s32.totalorder %s53, 0
      %s56 = sadd.s32 %s55, 1
      %s57 = scalar_select %p54, %s55, %s56
      %p60 = pneg %p54
      %p61 = scmp.eq.s32.totalorder %s24, 1
      %p62 = por %p60, %p61
      %p63 = scmp.ne.s32.totalorder %s55, %s58
      %p64 = scmp.eq.s32.totalorder %s24, 0
      %p65 = por %p63, %p64
      %p66 = scmp.ne.s32.totalorder %s55, %s58
      %p67 = scmp.eq.s32.totalorder %s29, 1
      %p68 = por %p66, %p67
      %p69 = scmp.ne.s32.totalorder %s58, %s59
      %p70 = scmp.eq.s32.totalorder %s29, 0
      %p71 = por %p69, %p70
      %p72 = scmp.ne.s32.totalorder %s58, %s59
      %p73 = scmp.eq.s32.totalorder %s30, 1
      %p74 = por %p72, %p73
      %p76 = scmp.ne.s32.totalorder %s59, %s75
      %p77 = scmp.eq.s32.totalorder %s30, 0
      %p78 = por %p76, %p77
      %s80 = sadd.s32 %s79, 1
      %p83 = scmp.eq.s32.totalorder %s24, 1
      %p84 = scmp.ne.s32.totalorder %s79, %s81
      %p85 = scmp.eq.s32.totalorder %s24, 0
      %p86 = por %p84, %p85
      %p87 = scmp.ne.s32.totalorder %s79, %s81
      %p88 = scmp.eq.s32.totalorder %s29, 1
      %p89 = por %p87, %p88
      %p90 = scmp.ne.s32.totalorder %s81, %s82
      %p91 = scmp.eq.s32.totalorder %s29, 0
      %p92 = por %p90, %p91
      %p93 = scmp.ne.s32.totalorder %s81, %s82
      %p94 = scmp.eq.s32.totalorder %s30, 1
      %p95 = por %p93, %p94
      %p97 = scmp.ne.s32.totalorder %s82, %s96
      %p98 = scmp.eq.s32.totalorder %s30, 0
      %p99 = por %p97, %p98
      %s101 = sadd.s32 %s100, 1
      %p104 = scmp.eq.s32.totalorder %s24, 1
      %p105 = scmp.ne.s32.totalorder %s100, %s102
      %p106 = scmp.eq.s32.totalorder %s24, 0
      %p107 = por %p105, %p106
      %p108 = scmp.ne.s32.totalorder %s100, %s102
      %p109 = scmp.eq.s32.totalorder %s29, 1
      %p110 = por %p108, %p109
      %p111 = scmp.ne.s32.totalorder %s102, %s103
      %p112 = scmp.eq.s32.totalorder %s29, 0
      %p113 = por %p111, %p112
      %p114 = scmp.ne.s32.totalorder %s102, %s103
      %p115 = scmp.eq.s32.totalorder %s30, 1
      %p116 = por %p114, %p115
      %p118 = scmp.ne.s32.totalorder %s103, %s117
      %p119 = scmp.eq.s32.totalorder %s30, 0
      %p120 = por %p118, %p119
      %s122 = sadd.s32 %s121, 1
      %p125 = scmp.eq.s32.totalorder %s24, 1
      %p126 = scmp.ne.s32.totalorder %s121, %s123
      %p127 = scmp.eq.s32.totalorder %s24, 0
      %p128 = por %p126, %p127
      %p129 = scmp.ne.s32.totalorder %s121, %s123
      %p130 = scmp.eq.s32.totalorder %s29, 1
      %p131 = por %p129, %p130
      %p132 = scmp.ne.s32.totalorder %s123, %s124
      %p133 = scmp.eq.s32.totalorder %s29, 0
      %p134 = por %p132, %p133
      %p135 = scmp.ne.s32.totalorder %s123, %s124
      %p136 = scmp.eq.s32.totalorder %s30, 1
      %p137 = por %p135, %p136
      %p139 = scmp.ne.s32.totalorder %s124, %s138
      %p140 = scmp.eq.s32.totalorder %s30, 0
      %p141 = por %p139, %p140
      %s143 = sadd.s32 %s142, 1
      %p146 = scmp.eq.s32.totalorder %s24, 1
      %p147 = scmp.ne.s32.totalorder %s142, %s144
      %p148 = scmp.eq.s32.totalorder %s24, 0
      %p149 = por %p147, %p148
      %p150 = scmp.ne.s32.totalorder %s142, %s144
      %p151 = scmp.eq.s32.totalorder %s29, 1
      %p152 = por %p150, %p151
      %p153 = scmp.ne.s32.totalorder %s144, %s145
      %p154 = scmp.eq.s32.totalorder %s29, 0
      %p155 = por %p153, %p154
      %p156 = scmp.ne.s32.totalorder %s144, %s145
      %p157 = scmp.eq.s32.totalorder %s30, 1
      %p158 = por %p156, %p157
      %p160 = scmp.ne.s32.totalorder %s145, %s159
      %p161 = scmp.eq.s32.totalorder %s30, 0
      %p162 = por %p160, %p161
      %s164 = sadd.s32 %s163, 1
      %p167 = scmp.eq.s32.totalorder %s24, 1
      %p168 = scmp.ne.s32.totalorder %s163, %s165
      %p169 = scmp.eq.s32.totalorder %s24, 0
      %p170 = por %p168, %p169
      %p171 = scmp.ne.s32.totalorder %s163, %s165
      %p172 = scmp.eq.s32.totalorder %s29, 1
      %p173 = por %p171, %p172
      %p174 = scmp.ne.s32.totalorder %s165, %s166
      %p175 = scmp.eq.s32.totalorder %s29, 0
      %p176 = por %p174, %p175
      %p177 = scmp.ne.s32.totalorder %s165, %s166
      %p178 = scmp.eq.s32.totalorder %s30, 1
      %p179 = por %p177, %p178
      %p181 = scmp.ne.s32.totalorder %s166, %s180
      %p182 = scmp.eq.s32.totalorder %s30, 0
      %p183 = por %p181, %p182
      %s185 = sadd.s32 %s184, 1
      %p188 = scmp.eq.s32.totalorder %s24, 1
      %p189 = scmp.ne.s32.totalorder %s184, %s186
      %p190 = scmp.eq.s32.totalorder %s24, 0
      %p191 = por %p189, %p190
      %p192 = scmp.ne.s32.totalorder %s184, %s186
      %p193 = scmp.eq.s32.totalorder %s29, 1
      %p194 = por %p192, %p193
      %p195 = scmp.ne.s32.totalorder %s186, %s187
      %p196 = scmp.eq.s32.totalorder %s29, 0
      %p197 = por %p195, %p196
      %p198 = scmp.ne.s32.totalorder %s186, %s187
      %p199 = scmp.eq.s32.totalorder %s30, 1
      %p200 = por %p198, %p199
      %p202 = scmp.ne.s32.totalorder %s187, %s201
      %p203 = scmp.eq.s32.totalorder %s30, 0
      %p204 = por %p202, %p203
      %s205 = ssub.s32 %s24, %s31
      %p206 = scmp.eq.s32.totalorder %s205, 0
      %s208 = sadd.s32 %s207, 1
      %s209 = scalar_select %p206, %s207, %s208
      %p212 = pneg %p206
      %p213 = scmp.eq.s32.totalorder %s24, 1
      %p214 = por %p212, %p213
      %p215 = scmp.ne.s32.totalorder %s207, %s210
      %p216 = scmp.eq.s32.totalorder %s24, 0
      %p217 = por %p215, %p216
      %p218 = scmp.ne.s32.totalorder %s207, %s210
      %p219 = scmp.eq.s32.totalorder %s29, 1
      %p220 = por %p218, %p219
      %p221 = scmp.ne.s32.totalorder %s210, %s211
      %p222 = scmp.eq.s32.totalorder %s29, 0
      %p223 = por %p221, %p222
      %p224 = scmp.ne.s32.totalorder %s210, %s211
      %p225 = scmp.eq.s32.totalorder %s30, 1
      %p226 = por %p224, %p225
      %p228 = scmp.ne.s32.totalorder %s211, %s227
      %p229 = scmp.eq.s32.totalorder %s30, 0
      %p230 = por %p228, %p229
      %p231 = scmp.le.s32.totalorder 1, %s24
      %p232 = scmp.lt.s32.totalorder %s24, 3
      %p233 = pnand %p231, %p232
      %p234 = pneg %p233
      // Predicated region
      $region9: #{tpu_custom_call.1} parent=5 // pred_check
        _
      $region10: #{tpu_custom_call.1} parent=5 // pred_check_branch
        %236 = sbr.rel (%p233) target = $region12
      $region11: #{tpu_custom_call.1} parent=5 // pred_region
        %s237 = ssub.s32 %s24, 1
        // Predicated region
        $region13: #{tpu_custom_call.1} parent=11 // pred_check
          %p238 = pneg %p45
        $region14: #{tpu_custom_call.1} parent=11 // pred_check_branch
          %240 = sbr.rel (%p238) target = $region16
        $region15: #{tpu_custom_call.1} parent=11 // pred_region
          %s242 = ssub.s32 256, 256
          %243 = vsyncadd [#allocation3], %s242
          %s244 = sshll.u32 [#allocation2], 4
          %s245 = int_to_ptr.vmem [resolvable:$true] %s244
          %250 = dma.hbm_to_vmem [thread:$0]  %s0, 256, %s245, [#allocation3], 64, 64, 4
        $region16: #{tpu_custom_call.1} parent=11 // pred_fallthru
          _
        // Predicated region
        $region17: #{tpu_custom_call.1} parent=11 // pred_check
          %p251 = pneg %p92
        $region18: #{tpu_custom_call.1} parent=11 // pred_check_branch
          %253 = sbr.rel (%p251) target = $region20
        $region19: #{tpu_custom_call.1} parent=11 // pred_region
          %s255 = ssub.s32 512, 512
          %256 = vsyncadd [#allocation6], %s255
          %s257 = sshll.u32 [#allocation7], 4
          %s258 = int_to_ptr.vmem [resolvable:$true] %s257
          %263 = dma.hbm_to_vmem [thread:$0]  %s2, 512, %s258, [#allocation6], 128, 128, 8
        $region20: #{tpu_custom_call.1} parent=11 // pred_fallthru
          _
        // Predicated region
        $region21: #{tpu_custom_call.1} parent=11 // pred_check
          %p264 = pneg %p113
        $region22: #{tpu_custom_call.1} parent=11 // pred_check_branch
          %266 = sbr.rel (%p264) target = $region24
        $region23: #{tpu_custom_call.1} parent=11 // pred_region
          %s268 = ssub.s32 16, 16
          %269 = vsyncadd [#allocation9], %s268
          %s271 = sshll.u32 [#allocation8], 4
          %s272 = int_to_ptr.vmem [resolvable:$true] %s271
          %274 = dma.hbm_to_vmem [thread:$0]  %s3, 16, %s272, [#allocation9]
        $region24: #{tpu_custom_call.1} parent=11 // pred_fallthru
          _
        // Predicated region
        $region25: #{tpu_custom_call.1} parent=11 // pred_check
          %p275 = pneg %p134
        $region26: #{tpu_custom_call.1} parent=11 // pred_check_branch
          %277 = sbr.rel (%p275) target = $region28
        $region27: #{tpu_custom_call.1} parent=11 // pred_region
          %s279 = ssub.s32 512, 512
          %280 = vsyncadd [#allocation9], %s279
          %s281 = sshll.u32 [#allocation10], 4
          %s282 = int_to_ptr.vmem [resolvable:$true] %s281
          %287 = dma.hbm_to_vmem [thread:$0]  %s4, 512, %s282, [#allocation9], 128, 128, 8
        $region28: #{tpu_custom_call.1} parent=11 // pred_fallthru
          _
        // Predicated region
        $region29: #{tpu_custom_call.1} parent=11 // pred_check
          %p288 = pneg %p155
        $region30: #{tpu_custom_call.1} parent=11 // pred_check_branch
          %290 = sbr.rel (%p288) target = $region32
        $region31: #{tpu_custom_call.1} parent=11 // pred_region
          %s292 = ssub.s32 16, 16
          %293 = vsyncadd [#allocation12], %s292
          %s295 = sshll.u32 [#allocation11], 4
          %s296 = int_to_ptr.vmem [resolvable:$true] %s295
          %298 = dma.hbm_to_vmem [thread:$0]  %s5, 16, %s296, [#allocation12]
        $region32: #{tpu_custom_call.1} parent=11 // pred_fallthru
          _
        // Predicated region
        $region33: #{tpu_custom_call.1} parent=11 // pred_check
          %p299 = pneg %p176
        $region34: #{tpu_custom_call.1} parent=11 // pred_check_branch
          %301 = sbr.rel (%p299) target = $region36
        $region35: #{tpu_custom_call.1} parent=11 // pred_region
          %s303 = ssub.s32 512, 512
          %304 = vsyncadd [#allocation12], %s303
          %s305 = sshll.u32 [#allocation13], 4
          %s306 = int_to_ptr.vmem [resolvable:$true] %s305
          %311 = dma.hbm_to_vmem [thread:$0]  %s6, 512, %s306, [#allocation12], 128, 128, 8
        $region36: #{tpu_custom_call.1} parent=11 // pred_fallthru
          _
        // Predicated region
        $region37: #{tpu_custom_call.1} parent=11 // pred_check
          %p312 = pneg %p197
        $region38: #{tpu_custom_call.1} parent=11 // pred_check_branch
          %314 = sbr.rel (%p312) target = $region40
        $region39: #{tpu_custom_call.1} parent=11 // pred_region
          %s316 = ssub.s32 16, 16
          %317 = vsyncadd [#allocation15], %s316
          %s319 = sshll.u32 [#allocation14], 4
          %s320 = int_to_ptr.vmem [resolvable:$true] %s319
          %322 = dma.hbm_to_vmem [thread:$0]  %s7, 16, %s320, [#allocation15]
        $region40: #{tpu_custom_call.1} parent=11 // pred_fallthru
          _
      $region12: #{tpu_custom_call.1} parent=5 // pred_fallthru
        _
      %p323 = scmp.lt.s32.totalorder %s24, 2
      // Predicated region
      $region41: #{tpu_custom_call.1} parent=5 // pred_check
        %p324 = pneg %p323
      $region42: #{tpu_custom_call.1} parent=5 // pred_check_branch
        %326 = sbr.rel (%p324) target = $region44
      $region43: #{tpu_custom_call.1} parent=5 // pred_region
        // Predicated region
        $region45: #{tpu_custom_call.1} parent=43 // pred_check
          %p327 = pneg %p65
        $region46: #{tpu_custom_call.1} parent=43 // pred_check_branch
          %329 = sbr.rel (%p327) target = $region48
        $region47: #{tpu_custom_call.1} parent=43 // pred_region
          %s330 = sand.u32 %s24, 1
          %s331 = scalar_lea.sflag [#allocation6], %s330
          %s332 = sand.u32 %s55, 1
          %s333 = smul.addr %s332, 8
          %s334 = scalar_lea.vmem [#allocation5], %s333
          %s336 = ssub.s32 128, 128
          %337 = vsyncadd %s331, %s336
          %s338 = smul.addr %s24, 128
          %s339 = scalar_lea.hbm %s1, %s338
          %s341 = sshll.u32 %s334, 4
          %s342 = int_to_ptr.vmem [resolvable:$true] %s341
          %344 = dma.hbm_to_vmem [thread:$0]  %s339, 128, %s342, %s331
        $region48: #{tpu_custom_call.1} parent=43 // pred_fallthru
          _
      $region44: #{tpu_custom_call.1} parent=5 // pred_fallthru
        _
      %p345 = scmp.le.s32.totalorder 1, %s24
      %p346 = scmp.lt.s32.totalorder %s24, 3
      %p347 = pnand %p345, %p346
      %p348 = pneg %p347
      // Predicated region
      $region49: #{tpu_custom_call.1} parent=5 // pred_check
        _
      $region50: #{tpu_custom_call.1} parent=5 // pred_check_branch
        %350 = sbr.rel (%p347) target = $region52
      $region51: #{tpu_custom_call.1} parent=5 // pred_region
        %s351 = ssub.s32 %s24, 1
        // Predicated region
        $region53: #{tpu_custom_call.1} parent=51 // pred_check
          %p352 = pneg %p45
        $region54: #{tpu_custom_call.1} parent=51 // pred_check_branch
          %354 = sbr.rel (%p352) target = $region56
        $region55: #{tpu_custom_call.1} parent=51 // pred_region
          %355 = dma.done [#allocation3], 256
        $region56: #{tpu_custom_call.1} parent=51 // pred_fallthru
          _
        %s356 = sand.u32 %s29, 1
        %s357 = scalar_lea.sflag [#allocation6], %s356
        %s358 = sand.u32 %s58, 1
        %s359 = smul.addr %s358, 8
        %s360 = scalar_lea.vmem [#allocation5], %s359
        // Predicated region
        $region57: #{tpu_custom_call.1} parent=51 // pred_check
          %p361 = pneg %p71
        $region58: #{tpu_custom_call.1} parent=51 // pred_check_branch
          %363 = sbr.rel (%p361) target = $region60
        $region59: #{tpu_custom_call.1} parent=51 // pred_region
          %364 = dma.done %s357, 128
        $region60: #{tpu_custom_call.1} parent=51 // pred_fallthru
          _
        // Predicated region
        $region61: #{tpu_custom_call.1} parent=51 // pred_check
          %p365 = pneg %p92
        $region62: #{tpu_custom_call.1} parent=51 // pred_check_branch
          %367 = sbr.rel (%p365) target = $region64
        $region63: #{tpu_custom_call.1} parent=51 // pred_region
          %368 = dma.done [#allocation6], 512
        $region64: #{tpu_custom_call.1} parent=51 // pred_fallthru
          _
        // Predicated region
        $region65: #{tpu_custom_call.1} parent=51 // pred_check
          %p369 = pneg %p113
        $region66: #{tpu_custom_call.1} parent=51 // pred_check_branch
          %371 = sbr.rel (%p369) target = $region68
        $region67: #{tpu_custom_call.1} parent=51 // pred_region
          %372 = dma.done [#allocation9], 16
        $region68: #{tpu_custom_call.1} parent=51 // pred_fallthru
          _
        // Predicated region
        $region69: #{tpu_custom_call.1} parent=51 // pred_check
          %p373 = pneg %p134
        $region70: #{tpu_custom_call.1} parent=51 // pred_check_branch
          %375 = sbr.rel (%p373) target = $region72
        $region71: #{tpu_custom_call.1} parent=51 // pred_region
          %376 = dma.done [#allocation9], 512
        $region72: #{tpu_custom_call.1} parent=51 // pred_fallthru
          _
        // Predicated region
        $region73: #{tpu_custom_call.1} parent=51 // pred_check
          %p377 = pneg %p155
        $region74: #{tpu_custom_call.1} parent=51 // pred_check_branch
          %379 = sbr.rel (%p377) target = $region76
        $region75: #{tpu_custom_call.1} parent=51 // pred_region
          %380 = dma.done [#allocation12], 16
        $region76: #{tpu_custom_call.1} parent=51 // pred_fallthru
          _
        // Predicated region
        $region77: #{tpu_custom_call.1} parent=51 // pred_check
          %p381 = pneg %p176
        $region78: #{tpu_custom_call.1} parent=51 // pred_check_branch
          %383 = sbr.rel (%p381) target = $region80
        $region79: #{tpu_custom_call.1} parent=51 // pred_region
          %384 = dma.done [#allocation12], 512
        $region80: #{tpu_custom_call.1} parent=51 // pred_fallthru
          _
        // Predicated region
        $region81: #{tpu_custom_call.1} parent=51 // pred_check
          %p385 = pneg %p197
        $region82: #{tpu_custom_call.1} parent=51 // pred_check_branch
          %387 = sbr.rel (%p385) target = $region84
        $region83: #{tpu_custom_call.1} parent=51 // pred_region
          %388 = dma.done [#allocation15], 16
        $region84: #{tpu_custom_call.1} parent=51 // pred_fallthru
          _
        %p389 = pneg %p45
        %p390 = pneg %p42
        %s391 = sand.u32 %s29, 1
        %s392 = scalar_lea.sflag [#allocation6], %s391
        %s393 = sand.u32 %s58, 1
        %s394 = smul.addr %s393, 8
        %s395 = scalar_lea.vmem [#allocation5], %s394
        %p396 = pneg %p71
        %p397 = pneg %p68
        %p398 = pneg %p92
        %p399 = pneg %p89
        %p400 = pneg %p113
        %p401 = pneg %p110
        %p402 = pneg %p134
        %p403 = pneg %p131
        %p404 = pneg %p155
        %p405 = pneg %p152
        %p406 = pneg %p176
        %p407 = pneg %p173
        %p408 = pneg %p197
        %p409 = pneg %p194
        %p410 = pneg %p223
        %p411 = pneg %p220
        %s412 = sand.u32 %s210, 1
        %s413 = scalar_lea.sflag [#allocation4], %s412
        %s414 = sand.u32 %s210, 1
        %s415 = smul.addr %s414, 4
        %s416 = scalar_lea.vmem [#allocation16], %s415
        %v417 = vld [vmem:[%s360] sm:$0xff]
        %v418 = vld [vmem:[#allocation7] sm:$0xff]
        %v419 = vld [vmem:[#allocation7 + $0x8] sm:$0xff]
        %v420 = vld [vmem:[#allocation7 + $0x10] sm:$0xff]
        %v421 = vld [vmem:[#allocation7 + $0x18] sm:$0xff]
        %v422 = vld [vmem:[#allocation8] sm:$0x1]
        %v424 = vlaneseq
        %v425 = vshrl.u32 %v424, 7
        %v426 = vsub.s32 0, %v425
        %v427 = vrot.slane %v422, %v426
        %vm429 = vcmask 261120
        %v431 = vsel %vm429, %v417, 0
        %433 = vmatprep.subr.mxu0 0.0
        %434 = vmatpush1.msra.mxu0 %v418
        %435 = vmatprep.subr.mxu0 0.0
        %436 = vmatpush1.msra.mxu0 %v419
        %437 = vmatprep.subr.mxu0 0.0
        %438 = vmatpush1.msra.mxu0 %v420
        %439 = vmatprep.subr.mxu0 0.0
        %440 = vmatpush1.msra.mxu0 %v421
        %441 = vmatprep.subr.mxu0 0.0
        %442 = vmatpush1.msra.mxu0 0.0
        %443 = vmatprep.subr.mxu0 0.0
        %444 = vmatpush1.msra.mxu0 0.0
        %445 = vmatprep.subr.mxu0 0.0
        %446 = vmatpush1.msra.mxu0 0.0
        %447 = vmatprep.subr.mxu0 0.0
        %448 = vmatpush1.msra.mxu0 0.0
        %449 = vmatprep.subr.mxu0 0.0
        %450 = vmatpush1.msra.mxu0 0.0
        %451 = vmatprep.subr.mxu0 0.0
        %452 = vmatpush1.msra.mxu0 0.0
        %453 = vmatprep.subr.mxu0 0.0
        %454 = vmatpush1.msra.mxu0 0.0
        %455 = vmatprep.subr.mxu0 0.0
        %456 = vmatpush1.msra.mxu0 0.0
        %457 = vmatprep.subr.mxu0 0.0
        %458 = vmatpush1.msra.mxu0 0.0
        %459 = vmatprep.subr.mxu0 0.0
        %460 = vmatpush1.msra.mxu0 0.0
        %461 = vmatprep.subr.mxu0 0.0
        %462 = vmatpush1.msra.mxu0 0.0
        %463 = vmatprep.subr.mxu0 0.0
        %464 = vmatpush1.msra.mxu0 0.0
        %465 = vmatprep.subr.mxu0 0.0
        %466 = vmatpush1.msra.mxu0 0.0
        %467 = vmatprep.subr.mxu0 0.0
        %468 = vmatpush1.msra.mxu0 0.0
        %469 = vmatprep.subr.mxu0 0.0
        %470 = vmatpush1.msra.mxu0 0.0
        %471 = vmatprep.subr.mxu0 0.0
        %472 = vmatpush1.msra.mxu0 0.0
        %473 = vmatprep.subr.mxu0 0.0
        %474 = vmatpush1.msra.mxu0 0.0
        %475 = vmatprep.subr.mxu0 0.0
        %476 = vmatpush1.msra.mxu0 0.0
        %477 = vmatprep.subr.mxu0 0.0
        %478 = vmatpush1.msra.mxu0 0.0
        %479 = vmatprep.subr.mxu0 0.0
        %480 = vmatpush1.msra.mxu0 0.0
        %481 = vmatprep.subr.mxu0 0.0
        %482 = vmatpush1.msra.mxu0 0.0
        %483 = vmatprep.subr.mxu0 0.0
        %484 = vmatpush1.msra.mxu0 0.0
        %485 = vmatprep.subr.mxu0 0.0
        %486 = vmatpush1.msra.mxu0 0.0
        %487 = vmatprep.subr.mxu0 0.0
        %488 = vmatpush1.msra.mxu0 0.0
        %489 = vmatprep.subr.mxu0 0.0
        %490 = vmatpush1.msra.mxu0 0.0
        %491 = vmatprep.subr.mxu0 0.0
        %492 = vmatpush1.msra.mxu0 0.0
        %493 = vmatprep.subr.mxu0 0.0
        %494 = vmatpush1.msra.mxu0 0.0
        %495 = vmatprep.subr.mxu0 0.0
        %496 = vmatpush1.msra.mxu0 0.0
        %497 = vmatprep.mubr.f32.mxu0 0.0
        %498 = vmatmul.mubr.f32.gmra.mrb[0].mxu0 %v431
        %v499 = vpop.f32.mrb[0].mxu0
        %v500 = vadd.f32 %v427, %v499
        %v501 = vpop.f32.mrb[0].mxu0
        %502 = vdwg.mxu0
        %v503 = vld [vmem:[#allocation10] sm:$0xff]
        %v504 = vld [vmem:[#allocation10 + $0x8] sm:$0xff]
        %v505 = vld [vmem:[#allocation10 + $0x10] sm:$0xff]
        %v506 = vld [vmem:[#allocation10 + $0x18] sm:$0xff]
        %v507 = vld [vmem:[#allocation11] sm:$0x1]
        %v509 = vlaneseq
        %v510 = vshrl.u32 %v509, 7
        %v511 = vsub.s32 0, %v510
        %v512 = vrot.slane %v507, %v511
        %514 = vmatprep.subr.mxu0 0.0
        %515 = vmatpush1.msra.mxu0 %v503
        %516 = vmatprep.subr.mxu0 0.0
        %517 = vmatpush1.msra.mxu0 %v504
        %518 = vmatprep.subr.mxu0 0.0
        %519 = vmatpush1.msra.mxu0 %v505
        %520 = vmatprep.subr.mxu0 0.0
        %521 = vmatpush1.msra.mxu0 %v506
        %522 = vmatprep.subr.mxu0 0.0
        %523 = vmatpush1.msra.mxu0 0.0
        %524 = vmatprep.subr.mxu0 0.0
        %525 = vmatpush1.msra.mxu0 0.0
        %526 = vmatprep.subr.mxu0 0.0
        %527 = vmatpush1.msra.mxu0 0.0
        %528 = vmatprep.subr.mxu0 0.0
        %529 = vmatpush1.msra.mxu0 0.0
        %530 = vmatprep.subr.mxu0 0.0
        %531 = vmatpush1.msra.mxu0 0.0
        %532 = vmatprep.subr.mxu0 0.0
        %533 = vmatpush1.msra.mxu0 0.0
        %534 = vmatprep.subr.mxu0 0.0
        %535 = vmatpush1.msra.mxu0 0.0
        %536 = vmatprep.subr.mxu0 0.0
        %537 = vmatpush1.msra.mxu0 0.0
        %538 = vmatprep.subr.mxu0 0.0
        %539 = vmatpush1.msra.mxu0 0.0
        %540 = vmatprep.subr.mxu0 0.0
        %541 = vmatpush1.msra.mxu0 0.0
        %542 = vmatprep.subr.mxu0 0.0
        %543 = vmatpush1.msra.mxu0 0.0
        %544 = vmatprep.subr.mxu0 0.0
        %545 = vmatpush1.msra.mxu0 0.0
        %546 = vmatprep.subr.mxu0 0.0
        %547 = vmatpush1.msra.mxu0 0.0
        %548 = vmatprep.subr.mxu0 0.0
        %549 = vmatpush1.msra.mxu0 0.0
        %550 = vmatprep.subr.mxu0 0.0
        %551 = vmatpush1.msra.mxu0 0.0
        %552 = vmatprep.subr.mxu0 0.0
        %553 = vmatpush1.msra.mxu0 0.0
        %554 = vmatprep.subr.mxu0 0.0
        %555 = vmatpush1.msra.mxu0 0.0
        %556 = vmatprep.subr.mxu0 0.0
        %557 = vmatpush1.msra.mxu0 0.0
        %558 = vmatprep.subr.mxu0 0.0
        %559 = vmatpush1.msra.mxu0 0.0
        %560 = vmatprep.subr.mxu0 0.0
        %561 = vmatpush1.msra.mxu0 0.0
        %562 = vmatprep.subr.mxu0 0.0
        %563 = vmatpush1.msra.mxu0 0.0
        %564 = vmatprep.subr.mxu0 0.0
        %565 = vmatpush1.msra.mxu0 0.0
        %566 = vmatprep.subr.mxu0 0.0
        %567 = vmatpush1.msra.mxu0 0.0
        %568 = vmatprep.subr.mxu0 0.0
        %569 = vmatpush1.msra.mxu0 0.0
        %570 = vmatprep.subr.mxu0 0.0
        %571 = vmatpush1.msra.mxu0 0.0
        %572 = vmatprep.subr.mxu0 0.0
        %573 = vmatpush1.msra.mxu0 0.0
        %574 = vmatprep.subr.mxu0 0.0
        %575 = vmatpush1.msra.mxu0 0.0
        %576 = vmatprep.subr.mxu0 0.0
        %577 = vmatpush1.msra.mxu0 0.0
        %578 = vmatprep.mubr.f32.mxu0 0.0
        %579 = vmatmul.mubr.f32.gmra.mrb[0].mxu0 %v431
        %v580 = vpop.f32.mrb[0].mxu0
        %v581 = vadd.f32 %v512, %v580
        %v582 = vpop.f32.mrb[0].mxu0
        %583 = vdwg.mxu0
        %v584 = vld [vmem:[#allocation2] sm:$0xf]
        %vm585 = vcmask 64512
        %v587 = vsel %vm585, %v584, 0
        %v590 = vsel %vm585, %v500, 0
        %592 = vmatprep.subr.mxu0 0.0
        %593 = vmatpush1.xpose.msra.mxu0 %v590
        %594 = vmatprep.subr.mxu0 0.0
        %595 = vmatpush1.xpose.msra.mxu0 0.0
        %596 = vmatprep.subr.mxu0 0.0
        %597 = vmatpush1.xpose.msra.mxu0 0.0
        %598 = vmatprep.subr.mxu0 0.0
        %599 = vmatpush1.xpose.msra.mxu0 0.0
        %600 = vmatprep.subr.mxu0 0.0
        %601 = vmatpush1.xpose.msra.mxu0 0.0
        %602 = vmatprep.subr.mxu0 0.0
        %603 = vmatpush1.xpose.msra.mxu0 0.0
        %604 = vmatprep.subr.mxu0 0.0
        %605 = vmatpush1.xpose.msra.mxu0 0.0
        %606 = vmatprep.subr.mxu0 0.0
        %607 = vmatpush1.xpose.msra.mxu0 0.0
        %608 = vmatprep.subr.mxu0 0.0
        %609 = vmatpush1.xpose.msra.mxu0 0.0
        %610 = vmatprep.subr.mxu0 0.0
        %611 = vmatpush1.xpose.msra.mxu0 0.0
        %612 = vmatprep.subr.mxu0 0.0
        %613 = vmatpush1.xpose.msra.mxu0 0.0
        %614 = vmatprep.subr.mxu0 0.0
        %615 = vmatpush1.xpose.msra.mxu0 0.0
        %616 = vmatprep.subr.mxu0 0.0
        %617 = vmatpush1.xpose.msra.mxu0 0.0
        %618 = vmatprep.subr.mxu0 0.0
        %619 = vmatpush1.xpose.msra.mxu0 0.0
        %620 = vmatprep.subr.mxu0 0.0
        %621 = vmatpush1.xpose.msra.mxu0 0.0
        %622 = vmatprep.subr.mxu0 0.0
        %623 = vmatpush1.xpose.msra.mxu0 0.0
        %624 = vmatprep.subr.mxu0 0.0
        %625 = vmatpush1.xpose.msra.mxu0 0.0
        %626 = vmatprep.subr.mxu0 0.0
        %627 = vmatpush1.xpose.msra.mxu0 0.0
        %628 = vmatprep.subr.mxu0 0.0
        %629 = vmatpush1.xpose.msra.mxu0 0.0
        %630 = vmatprep.subr.mxu0 0.0
        %631 = vmatpush1.xpose.msra.mxu0 0.0
        %632 = vmatprep.subr.mxu0 0.0
        %633 = vmatpush1.xpose.msra.mxu0 0.0
        %634 = vmatprep.subr.mxu0 0.0
        %635 = vmatpush1.xpose.msra.mxu0 0.0
        %636 = vmatprep.subr.mxu0 0.0
        %637 = vmatpush1.xpose.msra.mxu0 0.0
        %638 = vmatprep.subr.mxu0 0.0
        %639 = vmatpush1.xpose.msra.mxu0 0.0
        %640 = vmatprep.subr.mxu0 0.0
        %641 = vmatpush1.xpose.msra.mxu0 0.0
        %642 = vmatprep.subr.mxu0 0.0
        %643 = vmatpush1.xpose.msra.mxu0 0.0
        %644 = vmatprep.subr.mxu0 0.0
        %645 = vmatpush1.xpose.msra.mxu0 0.0
        %646 = vmatprep.subr.mxu0 0.0
        %647 = vmatpush1.xpose.msra.mxu0 0.0
        %648 = vmatprep.subr.mxu0 0.0
        %649 = vmatpush1.xpose.msra.mxu0 0.0
        %650 = vmatprep.subr.mxu0 0.0
        %651 = vmatpush1.xpose.msra.mxu0 0.0
        %652 = vmatprep.subr.mxu0 0.0
        %653 = vmatpush1.xpose.msra.mxu0 0.0
        %654 = vmatprep.subr.mxu0 0.0
        %655 = vmatpush1.xpose.msra.mxu0 0.0
        %656 = vmatprep.mubr.f32.mxu0 0.0
        %657 = vmatmul.mubr.f32.gmra.mrb[0].mxu0 %v587
        %v658 = vpop.f32.mrb[0].mxu0
        %v659 = vadd.f32 0.0, %v658
        %v660 = vpop.f32.mrb[0].mxu0
        %661 = vdwg.mxu0
        %vm662 = vcmask 60416
        %v663 = vsel %vm662, %v659, -inf
        %664 = vmax.xlane.f32.xlu0 %v663
        %v665 = vpop.xlane.xlu0 %664
        %v666 = vsub.f32 %v659, %v665
        %v667 = vmul.f32 %v666, 1.442695
        %v668 = vpow.pop %v667
        %v669 = vsel %vm662, %v668, 0.0
        %670 = vadd.xlane.f32.xlu0 %v669
        %v671 = vpop.xlane.xlu0 %670
        %v672 = vrcp.pop %v671
        %v673 = vmul.f32 %v668, %v672
        %v675 = vsel %vm585, %v673, 0
        %677 = vmatprep.subr.mxu0 0.0
        %678 = vmatpush1.msra.mxu0 %v581
        %679 = vmatprep.subr.mxu0 0.0
        %680 = vmatpush1.msra.mxu0 0.0
        %681 = vmatprep.subr.mxu0 0.0
        %682 = vmatpush1.msra.mxu0 0.0
        %683 = vmatprep.subr.mxu0 0.0
        %684 = vmatpush1.msra.mxu0 0.0
        %685 = vmatprep.subr.mxu0 0.0
        %686 = vmatpush1.msra.mxu0 0.0
        %687 = vmatprep.subr.mxu0 0.0
        %688 = vmatpush1.msra.mxu0 0.0
        %689 = vmatprep.subr.mxu0 0.0
        %690 = vmatpush1.msra.mxu0 0.0
        %691 = vmatprep.subr.mxu0 0.0
        %692 = vmatpush1.msra.mxu0 0.0
        %693 = vmatprep.subr.mxu0 0.0
        %694 = vmatpush1.msra.mxu0 0.0
        %695 = vmatprep.subr.mxu0 0.0
        %696 = vmatpush1.msra.mxu0 0.0
        %697 = vmatprep.subr.mxu0 0.0
        %698 = vmatpush1.msra.mxu0 0.0
        %699 = vmatprep.subr.mxu0 0.0
        %700 = vmatpush1.msra.mxu0 0.0
        %701 = vmatprep.subr.mxu0 0.0
        %702 = vmatpush1.msra.mxu0 0.0
        %703 = vmatprep.subr.mxu0 0.0
        %704 = vmatpush1.msra.mxu0 0.0
        %705 = vmatprep.subr.mxu0 0.0
        %706 = vmatpush1.msra.mxu0 0.0
        %707 = vmatprep.subr.mxu0 0.0
        %708 = vmatpush1.msra.mxu0 0.0
        %709 = vmatprep.subr.mxu0 0.0
        %710 = vmatpush1.msra.mxu0 0.0
        %711 = vmatprep.subr.mxu0 0.0
        %712 = vmatpush1.msra.mxu0 0.0
        %713 = vmatprep.subr.mxu0 0.0
        %714 = vmatpush1.msra.mxu0 0.0
        %715 = vmatprep.subr.mxu0 0.0
        %716 = vmatpush1.msra.mxu0 0.0
        %717 = vmatprep.subr.mxu0 0.0
        %718 = vmatpush1.msra.mxu0 0.0
        %719 = vmatprep.subr.mxu0 0.0
        %720 = vmatpush1.msra.mxu0 0.0
        %721 = vmatprep.subr.mxu0 0.0
        %722 = vmatpush1.msra.mxu0 0.0
        %723 = vmatprep.subr.mxu0 0.0
        %724 = vmatpush1.msra.mxu0 0.0
        %725 = vmatprep.subr.mxu0 0.0
        %726 = vmatpush1.msra.mxu0 0.0
        %727 = vmatprep.subr.mxu0 0.0
        %728 = vmatpush1.msra.mxu0 0.0
        %729 = vmatprep.subr.mxu0 0.0
        %730 = vmatpush1.msra.mxu0 0.0
        %731 = vmatprep.subr.mxu0 0.0
        %732 = vmatpush1.msra.mxu0 0.0
        %733 = vmatprep.subr.mxu0 0.0
        %734 = vmatpush1.msra.mxu0 0.0
        %735 = vmatprep.subr.mxu0 0.0
        %736 = vmatpush1.msra.mxu0 0.0
        %737 = vmatprep.subr.mxu0 0.0
        %738 = vmatpush1.msra.mxu0 0.0
        %739 = vmatprep.subr.mxu0 0.0
        %740 = vmatpush1.msra.mxu0 0.0
        %741 = vmatprep.mubr.f32.mxu0 0.0
        %742 = vmatmul.mubr.f32.gmra.mrb[0].mxu0 %v675
        %v743 = vpop.f32.mrb[0].mxu0
        %v744 = vadd.f32 0.0, %v743
        %v745 = vpop.f32.mrb[0].mxu0
        %746 = vdwg.mxu0
        %v747 = vadd.f32 %v584, %v744
        %s748 = scalar_lea.vmem [#allocation2], 4
        %v749 = vld [vmem:[%s748] sm:$0xf]
        %750 = vrot.lane.b32.xlu0 %v500, 120
        %v751 = vpop.permute.xlu0 %750
        %v753 = vsel %vm585, %v749, 0
        %v755 = vsel %vm585, %v751, 0
        %757 = vmatprep.subr.mxu0 0.0
        %758 = vmatpush1.xpose.msra.mxu0 %v755
        %759 = vmatprep.subr.mxu0 0.0
        %760 = vmatpush1.xpose.msra.mxu0 0.0
        %761 = vmatprep.subr.mxu0 0.0
        %762 = vmatpush1.xpose.msra.mxu0 0.0
        %763 = vmatprep.subr.mxu0 0.0
        %764 = vmatpush1.xpose.msra.mxu0 0.0
        %765 = vmatprep.subr.mxu0 0.0
        %766 = vmatpush1.xpose.msra.mxu0 0.0
        %767 = vmatprep.subr.mxu0 0.0
        %768 = vmatpush1.xpose.msra.mxu0 0.0
        %769 = vmatprep.subr.mxu0 0.0
        %770 = vmatpush1.xpose.msra.mxu0 0.0
        %771 = vmatprep.subr.mxu0 0.0
        %772 = vmatpush1.xpose.msra.mxu0 0.0
        %773 = vmatprep.subr.mxu0 0.0
        %774 = vmatpush1.xpose.msra.mxu0 0.0
        %775 = vmatprep.subr.mxu0 0.0
        %776 = vmatpush1.xpose.msra.mxu0 0.0
        %777 = vmatprep.subr.mxu0 0.0
        %778 = vmatpush1.xpose.msra.mxu0 0.0
        %779 = vmatprep.subr.mxu0 0.0
        %780 = vmatpush1.xpose.msra.mxu0 0.0
        %781 = vmatprep.subr.mxu0 0.0
        %782 = vmatpush1.xpose.msra.mxu0 0.0
        %783 = vmatprep.subr.mxu0 0.0
        %784 = vmatpush1.xpose.msra.mxu0 0.0
        %785 = vmatprep.subr.mxu0 0.0
        %786 = vmatpush1.xpose.msra.mxu0 0.0
        %787 = vmatprep.subr.mxu0 0.0
        %788 = vmatpush1.xpose.msra.mxu0 0.0
        %789 = vmatprep.subr.mxu0 0.0
        %790 = vmatpush1.xpose.msra.mxu0 0.0
        %791 = vmatprep.subr.mxu0 0.0
        %792 = vmatpush1.xpose.msra.mxu0 0.0
        %793 = vmatprep.subr.mxu0 0.0
        %794 = vmatpush1.xpose.msra.mxu0 0.0
        %795 = vmatprep.subr.mxu0 0.0
        %796 = vmatpush1.xpose.msra.mxu0 0.0
        %797 = vmatprep.subr.mxu0 0.0
        %798 = vmatpush1.xpose.msra.mxu0 0.0
        %799 = vmatprep.subr.mxu0 0.0
        %800 = vmatpush1.xpose.msra.mxu0 0.0
        %801 = vmatprep.subr.mxu0 0.0
        %802 = vmatpush1.xpose.msra.mxu0 0.0
        %803 = vmatprep.subr.mxu0 0.0
        %804 = vmatpush1.xpose.msra.mxu0 0.0
        %805 = vmatprep.subr.mxu0 0.0
        %806 = vmatpush1.xpose.msra.mxu0 0.0
        %807 = vmatprep.subr.mxu0 0.0
        %808 = vmatpush1.xpose.msra.mxu0 0.0
        %809 = vmatprep.subr.mxu0 0.0
        %810 = vmatpush1.xpose.msra.mxu0 0.0
        %811 = vmatprep.subr.mxu0 0.0
        %812 = vmatpush1.xpose.msra.mxu0 0.0
        %813 = vmatprep.subr.mxu0 0.0
        %814 = vmatpush1.xpose.msra.mxu0 0.0
        %815 = vmatprep.subr.mxu0 0.0
        %816 = vmatpush1.xpose.msra.mxu0 0.0
        %817 = vmatprep.subr.mxu0 0.0
        %818 = vmatpush1.xpose.msra.mxu0 0.0
        %819 = vmatprep.subr.mxu0 0.0
        %820 = vmatpush1.xpose.msra.mxu0 0.0
        %821 = vmatprep.mubr.f32.mxu0 0.0
        %822 = vmatmul.mubr.f32.gmra.mrb[0].mxu0 %v753
        %v823 = vpop.f32.mrb[0].mxu0
        %v824 = vadd.f32 0.0, %v823
        %v825 = vpop.f32.mrb[0].mxu0
        %826 = vdwg.mxu0
        %v827 = vsel %vm662, %v824, -inf
        %828 = vmax.xlane.f32.xlu0 %v827
        %v829 = vpop.xlane.xlu0 %828
        %v830 = vsub.f32 %v824, %v829
        %v831 = vmul.f32 %v830, 1.442695
        %v832 = vpow.pop %v831
        %v833 = vsel %vm662, %v832, 0.0
        %834 = vadd.xlane.f32.xlu0 %v833
        %v835 = vpop.xlane.xlu0 %834
        %v836 = vrcp.pop %v835
        %v837 = vmul.f32 %v832, %v836
        %839 = vrot.lane.b32.xlu0 %v581, 120
        %v840 = vpop.permute.xlu0 %839
        %v843 = vsel %vm585, %v837, 0
        %845 = vmatprep.subr.mxu0 0.0
        %846 = vmatpush1.msra.mxu0 %v840
        %847 = vmatprep.subr.mxu0 0.0
        %848 = vmatpush1.msra.mxu0 0.0
        %849 = vmatprep.subr.mxu0 0.0
        %850 = vmatpush1.msra.mxu0 0.0
        %851 = vmatprep.subr.mxu0 0.0
        %852 = vmatpush1.msra.mxu0 0.0
        %853 = vmatprep.subr.mxu0 0.0
        %854 = vmatpush1.msra.mxu0 0.0
        %855 = vmatprep.subr.mxu0 0.0
        %856 = vmatpush1.msra.mxu0 0.0
        %857 = vmatprep.subr.mxu0 0.0
        %858 = vmatpush1.msra.mxu0 0.0
        %859 = vmatprep.subr.mxu0 0.0
        %860 = vmatpush1.msra.mxu0 0.0
        %861 = vmatprep.subr.mxu0 0.0
        %862 = vmatpush1.msra.mxu0 0.0
        %863 = vmatprep.subr.mxu0 0.0
        %864 = vmatpush1.msra.mxu0 0.0
        %865 = vmatprep.subr.mxu0 0.0
        %866 = vmatpush1.msra.mxu0 0.0
        %867 = vmatprep.subr.mxu0 0.0
        %868 = vmatpush1.msra.mxu0 0.0
        %869 = vmatprep.subr.mxu0 0.0
        %870 = vmatpush1.msra.mxu0 0.0
        %871 = vmatprep.subr.mxu0 0.0
        %872 = vmatpush1.msra.mxu0 0.0
        %873 = vmatprep.subr.mxu0 0.0
        %874 = vmatpush1.msra.mxu0 0.0
        %875 = vmatprep.subr.mxu0 0.0
        %876 = vmatpush1.msra.mxu0 0.0
        %877 = vmatprep.subr.mxu0 0.0
        %878 = vmatpush1.msra.mxu0 0.0
        %879 = vmatprep.subr.mxu0 0.0
        %880 = vmatpush1.msra.mxu0 0.0
        %881 = vmatprep.subr.mxu0 0.0
        %882 = vmatpush1.msra.mxu0 0.0
        %883 = vmatprep.subr.mxu0 0.0
        %884 = vmatpush1.msra.mxu0 0.0
        %885 = vmatprep.subr.mxu0 0.0
        %886 = vmatpush1.msra.mxu0 0.0
        %887 = vmatprep.subr.mxu0 0.0
        %888 = vmatpush1.msra.mxu0 0.0
        %889 = vmatprep.subr.mxu0 0.0
        %890 = vmatpush1.msra.mxu0 0.0
        %891 = vmatprep.subr.mxu0 0.0
        %892 = vmatpush1.msra.mxu0 0.0
        %893 = vmatprep.subr.mxu0 0.0
        %894 = vmatpush1.msra.mxu0 0.0
        %895 = vmatprep.subr.mxu0 0.0
        %896 = vmatpush1.msra.mxu0 0.0
        %897 = vmatprep.subr.mxu0 0.0
        %898 = vmatpush1.msra.mxu0 0.0
        %899 = vmatprep.subr.mxu0 0.0
        %900 = vmatpush1.msra.mxu0 0.0
        %901 = vmatprep.subr.mxu0 0.0
        %902 = vmatpush1.msra.mxu0 0.0
        %903 = vmatprep.subr.mxu0 0.0
        %904 = vmatpush1.msra.mxu0 0.0
        %905 = vmatprep.subr.mxu0 0.0
        %906 = vmatpush1.msra.mxu0 0.0
        %907 = vmatprep.subr.mxu0 0.0
        %908 = vmatpush1.msra.mxu0 0.0
        %909 = vmatprep.mubr.f32.mxu0 0.0
        %910 = vmatmul.mubr.f32.gmra.mrb[0].mxu0 %v843
        %v911 = vpop.f32.mrb[0].mxu0
        %v912 = vadd.f32 0.0, %v911
        %v913 = vpop.f32.mrb[0].mxu0
        %914 = vdwg.mxu0
        %v915 = vadd.f32 %v749, %v912
        %s916 = scalar_lea.vmem [#allocation2], 8
        %v917 = vld [vmem:[%s916] sm:$0xf]
        %918 = vrot.lane.b32.xlu0 %v500, 112
        %v919 = vpop.permute.xlu0 %918
        %v921 = vsel %vm585, %v917, 0
        %v923 = vsel %vm585, %v919, 0
        %925 = vmatprep.subr.mxu0 0.0
        %926 = vmatpush1.xpose.msra.mxu0 %v923
        %927 = vmatprep.subr.mxu0 0.0
        %928 = vmatpush1.xpose.msra.mxu0 0.0
        %929 = vmatprep.subr.mxu0 0.0
        %930 = vmatpush1.xpose.msra.mxu0 0.0
        %931 = vmatprep.subr.mxu0 0.0
        %932 = vmatpush1.xpose.msra.mxu0 0.0
        %933 = vmatprep.subr.mxu0 0.0
        %934 = vmatpush1.xpose.msra.mxu0 0.0
        %935 = vmatprep.subr.mxu0 0.0
        %936 = vmatpush1.xpose.msra.mxu0 0.0
        %937 = vmatprep.subr.mxu0 0.0
        %938 = vmatpush1.xpose.msra.mxu0 0.0
        %939 = vmatprep.subr.mxu0 0.0
        %940 = vmatpush1.xpose.msra.mxu0 0.0
        %941 = vmatprep.subr.mxu0 0.0
        %942 = vmatpush1.xpose.msra.mxu0 0.0
        %943 = vmatprep.subr.mxu0 0.0
        %944 = vmatpush1.xpose.msra.mxu0 0.0
        %945 = vmatprep.subr.mxu0 0.0
        %946 = vmatpush1.xpose.msra.mxu0 0.0
        %947 = vmatprep.subr.mxu0 0.0
        %948 = vmatpush1.xpose.msra.mxu0 0.0
        %949 = vmatprep.subr.mxu0 0.0
        %950 = vmatpush1.xpose.msra.mxu0 0.0
        %951 = vmatprep.subr.mxu0 0.0
        %952 = vmatpush1.xpose.msra.mxu0 0.0
        %953 = vmatprep.subr.mxu0 0.0
        %954 = vmatpush1.xpose.msra.mxu0 0.0
        %955 = vmatprep.subr.mxu0 0.0
        %956 = vmatpush1.xpose.msra.mxu0 0.0
        %957 = vmatprep.subr.mxu0 0.0
        %958 = vmatpush1.xpose.msra.mxu0 0.0
        %959 = vmatprep.subr.mxu0 0.0
        %960 = vmatpush1.xpose.msra.mxu0 0.0
        %961 = vmatprep.subr.mxu0 0.0
        %962 = vmatpush1.xpose.msra.mxu0 0.0
        %963 = vmatprep.subr.mxu0 0.0
        %964 = vmatpush1.xpose.msra.mxu0 0.0
        %965 = vmatprep.subr.mxu0 0.0
        %966 = vmatpush1.xpose.msra.mxu0 0.0
        %967 = vmatprep.subr.mxu0 0.0
        %968 = vmatpush1.xpose.msra.mxu0 0.0
        %969 = vmatprep.subr.mxu0 0.0
        %970 = vmatpush1.xpose.msra.mxu0 0.0
        %971 = vmatprep.subr.mxu0 0.0
        %972 = vmatpush1.xpose.msra.mxu0 0.0
        %973 = vmatprep.subr.mxu0 0.0
        %974 = vmatpush1.xpose.msra.mxu0 0.0
        %975 = vmatprep.subr.mxu0 0.0
        %976 = vmatpush1.xpose.msra.mxu0 0.0
        %977 = vmatprep.subr.mxu0 0.0
        %978 = vmatpush1.xpose.msra.mxu0 0.0
        %979 = vmatprep.subr.mxu0 0.0
        %980 = vmatpush1.xpose.msra.mxu0 0.0
        %981 = vmatprep.subr.mxu0 0.0
        %982 = vmatpush1.xpose.msra.mxu0 0.0
        %983 = vmatprep.subr.mxu0 0.0
        %984 = vmatpush1.xpose.msra.mxu0 0.0
        %985 = vmatprep.subr.mxu0 0.0
        %986 = vmatpush1.xpose.msra.mxu0 0.0
        %987 = vmatprep.subr.mxu0 0.0
        %988 = vmatpush1.xpose.msra.mxu0 0.0
        %989 = vmatprep.mubr.f32.mxu0 0.0
        %990 = vmatmul.mubr.f32.gmra.mrb[0].mxu0 %v921
        %v991 = vpop.f32.mrb[0].mxu0
        %v992 = vadd.f32 0.0, %v991
        %v993 = vpop.f32.mrb[0].mxu0
        %994 = vdwg.mxu0
        %v995 = vsel %vm662, %v992, -inf
        %996 = vmax.xlane.f32.xlu0 %v995
        %v997 = vpop.xlane.xlu0 %996
        %v998 = vsub.f32 %v992, %v997
        %v999 = vmul.f32 %v998, 1.442695
        %v1000 = vpow.pop %v999
        %v1001 = vsel %vm662, %v1000, 0.0
        %1002 = vadd.xlane.f32.xlu0 %v1001
        %v1003 = vpop.xlane.xlu0 %1002
        %v1004 = vrcp.pop %v1003
        %v1005 = vmul.f32 %v1000, %v1004
        %1006 = vrot.lane.b32.xlu0 %v581, 112
        %v1007 = vpop.permute.xlu0 %1006
        %v1010 = vsel %vm585, %v1005, 0
        %1012 = vmatprep.subr.mxu0 0.0
        %1013 = vmatpush1.msra.mxu0 %v1007
        %1014 = vmatprep.subr.mxu0 0.0
        %1015 = vmatpush1.msra.mxu0 0.0
        %1016 = vmatprep.subr.mxu0 0.0
        %1017 = vmatpush1.msra.mxu0 0.0
        %1018 = vmatprep.subr.mxu0 0.0
        %1019 = vmatpush1.msra.mxu0 0.0
        %1020 = vmatprep.subr.mxu0 0.0
        %1021 = vmatpush1.msra.mxu0 0.0
        %1022 = vmatprep.subr.mxu0 0.0
        %1023 = vmatpush1.msra.mxu0 0.0
        %1024 = vmatprep.subr.mxu0 0.0
        %1025 = vmatpush1.msra.mxu0 0.0
        %1026 = vmatprep.subr.mxu0 0.0
        %1027 = vmatpush1.msra.mxu0 0.0
        %1028 = vmatprep.subr.mxu0 0.0
        %1029 = vmatpush1.msra.mxu0 0.0
        %1030 = vmatprep.subr.mxu0 0.0
        %1031 = vmatpush1.msra.mxu0 0.0
        %1032 = vmatprep.subr.mxu0 0.0
        %1033 = vmatpush1.msra.mxu0 0.0
        %1034 = vmatprep.subr.mxu0 0.0
        %1035 = vmatpush1.msra.mxu0 0.0
        %1036 = vmatprep.subr.mxu0 0.0
        %1037 = vmatpush1.msra.mxu0 0.0
        %1038 = vmatprep.subr.mxu0 0.0
        %1039 = vmatpush1.msra.mxu0 0.0
        %1040 = vmatprep.subr.mxu0 0.0
        %1041 = vmatpush1.msra.mxu0 0.0
        %1042 = vmatprep.subr.mxu0 0.0
        %1043 = vmatpush1.msra.mxu0 0.0
        %1044 = vmatprep.subr.mxu0 0.0
        %1045 = vmatpush1.msra.mxu0 0.0
        %1046 = vmatprep.subr.mxu0 0.0
        %1047 = vmatpush1.msra.mxu0 0.0
        %1048 = vmatprep.subr.mxu0 0.0
        %1049 = vmatpush1.msra.mxu0 0.0
        %1050 = vmatprep.subr.mxu0 0.0
        %1051 = vmatpush1.msra.mxu0 0.0
        %1052 = vmatprep.subr.mxu0 0.0
        %1053 = vmatpush1.msra.mxu0 0.0
        %1054 = vmatprep.subr.mxu0 0.0
        %1055 = vmatpush1.msra.mxu0 0.0
        %1056 = vmatprep.subr.mxu0 0.0
        %1057 = vmatpush1.msra.mxu0 0.0
        %1058 = vmatprep.subr.mxu0 0.0
        %1059 = vmatpush1.msra.mxu0 0.0
        %1060 = vmatprep.subr.mxu0 0.0
        %1061 = vmatpush1.msra.mxu0 0.0
        %1062 = vmatprep.subr.mxu0 0.0
        %1063 = vmatpush1.msra.mxu0 0.0
        %1064 = vmatprep.subr.mxu0 0.0
        %1065 = vmatpush1.msra.mxu0 0.0
        %1066 = vmatprep.subr.mxu0 0.0
        %1067 = vmatpush1.msra.mxu0 0.0
        %1068 = vmatprep.subr.mxu0 0.0
        %1069 = vmatpush1.msra.mxu0 0.0
        %1070 = vmatprep.subr.mxu0 0.0
        %1071 = vmatpush1.msra.mxu0 0.0
        %1072 = vmatprep.subr.mxu0 0.0
        %1073 = vmatpush1.msra.mxu0 0.0
        %1074 = vmatprep.subr.mxu0 0.0
        %1075 = vmatpush1.msra.mxu0 0.0
        %1076 = vmatprep.mubr.f32.mxu0 0.0
        %1077 = vmatmul.mubr.f32.gmra.mrb[0].mxu0 %v1010
        %v1078 = vpop.f32.mrb[0].mxu0
        %v1079 = vadd.f32 0.0, %v1078
        %v1080 = vpop.f32.mrb[0].mxu0
        %1081 = vdwg.mxu0
        %v1082 = vadd.f32 %v917, %v1079
        %s1083 = scalar_lea.vmem [#allocation2], 12
        %v1084 = vld [vmem:[%s1083] sm:$0xf]
        %1085 = vrot.lane.b32.xlu0 %v500, 104
        %v1086 = vpop.permute.xlu0 %1085
        %v1088 = vsel %vm585, %v1084, 0
        %v1090 = vsel %vm585, %v1086, 0
        %1092 = vmatprep.subr.mxu0 0.0
        %1093 = vmatpush1.xpose.msra.mxu0 %v1090
        %1094 = vmatprep.subr.mxu0 0.0
        %1095 = vmatpush1.xpose.msra.mxu0 0.0
        %1096 = vmatprep.subr.mxu0 0.0
        %1097 = vmatpush1.xpose.msra.mxu0 0.0
        %1098 = vmatprep.subr.mxu0 0.0
        %1099 = vmatpush1.xpose.msra.mxu0 0.0
        %1100 = vmatprep.subr.mxu0 0.0
        %1101 = vmatpush1.xpose.msra.mxu0 0.0
        %1102 = vmatprep.subr.mxu0 0.0
        %1103 = vmatpush1.xpose.msra.mxu0 0.0
        %1104 = vmatprep.subr.mxu0 0.0
        %1105 = vmatpush1.xpose.msra.mxu0 0.0
        %1106 = vmatprep.subr.mxu0 0.0
        %1107 = vmatpush1.xpose.msra.mxu0 0.0
        %1108 = vmatprep.subr.mxu0 0.0
        %1109 = vmatpush1.xpose.msra.mxu0 0.0
        %1110 = vmatprep.subr.mxu0 0.0
        %1111 = vmatpush1.xpose.msra.mxu0 0.0
        %1112 = vmatprep.subr.mxu0 0.0
        %1113 = vmatpush1.xpose.msra.mxu0 0.0
        %1114 = vmatprep.subr.mxu0 0.0
        %1115 = vmatpush1.xpose.msra.mxu0 0.0
        %1116 = vmatprep.subr.mxu0 0.0
        %1117 = vmatpush1.xpose.msra.mxu0 0.0
        %1118 = vmatprep.subr.mxu0 0.0
        %1119 = vmatpush1.xpose.msra.mxu0 0.0
        %1120 = vmatprep.subr.mxu0 0.0
        %1121 = vmatpush1.xpose.msra.mxu0 0.0
        %1122 = vmatprep.subr.mxu0 0.0
        %1123 = vmatpush1.xpose.msra.mxu0 0.0
        %1124 = vmatprep.subr.mxu0 0.0
        %1125 = vmatpush1.xpose.msra.mxu0 0.0
        %1126 = vmatprep.subr.mxu0 0.0
        %1127 = vmatpush1.xpose.msra.mxu0 0.0
        %1128 = vmatprep.subr.mxu0 0.0
        %1129 = vmatpush1.xpose.msra.mxu0 0.0
        %1130 = vmatprep.subr.mxu0 0.0
        %1131 = vmatpush1.xpose.msra.mxu0 0.0
        %1132 = vmatprep.subr.mxu0 0.0
        %1133 = vmatpush1.xpose.msra.mxu0 0.0
        %1134 = vmatprep.subr.mxu0 0.0
        %1135 = vmatpush1.xpose.msra.mxu0 0.0
        %1136 = vmatprep.subr.mxu0 0.0
        %1137 = vmatpush1.xpose.msra.mxu0 0.0
        %1138 = vmatprep.subr.mxu0 0.0
        %1139 = vmatpush1.xpose.msra.mxu0 0.0
        %1140 = vmatprep.subr.mxu0 0.0
        %1141 = vmatpush1.xpose.msra.mxu0 0.0
        %1142 = vmatprep.subr.mxu0 0.0
        %1143 = vmatpush1.xpose.msra.mxu0 0.0
        %1144 = vmatprep.subr.mxu0 0.0
        %1145 = vmatpush1.xpose.msra.mxu0 0.0
        %1146 = vmatprep.subr.mxu0 0.0
        %1147 = vmatpush1.xpose.msra.mxu0 0.0
        %1148 = vmatprep.subr.mxu0 0.0
        %1149 = vmatpush1.xpose.msra.mxu0 0.0
        %1150 = vmatprep.subr.mxu0 0.0
        %1151 = vmatpush1.xpose.msra.mxu0 0.0
        %1152 = vmatprep.subr.mxu0 0.0
        %1153 = vmatpush1.xpose.msra.mxu0 0.0
        %1154 = vmatprep.subr.mxu0 0.0
        %1155 = vmatpush1.xpose.msra.mxu0 0.0
        %1156 = vmatprep.mubr.f32.mxu0 0.0
        %1157 = vmatmul.mubr.f32.gmra.mrb[0].mxu0 %v1088
        %v1158 = vpop.f32.mrb[0].mxu0
        %v1159 = vadd.f32 0.0, %v1158
        %v1160 = vpop.f32.mrb[0].mxu0
        %1161 = vdwg.mxu0
        %v1162 = vsel %vm662, %v1159, -inf
        %1163 = vmax.xlane.f32.xlu0 %v1162
        %v1164 = vpop.xlane.xlu0 %1163
        %v1165 = vsub.f32 %v1159, %v1164
        %v1166 = vmul.f32 %v1165, 1.442695
        %v1167 = vpow.pop %v1166
        %v1168 = vsel %vm662, %v1167, 0.0
        %1169 = vadd.xlane.f32.xlu0 %v1168
        %v1170 = vpop.xlane.xlu0 %1169
        %v1171 = vrcp.pop %v1170
        %v1172 = vmul.f32 %v1167, %v1171
        %1173 = vrot.lane.b32.xlu0 %v581, 104
        %v1174 = vpop.permute.xlu0 %1173
        %v1177 = vsel %vm585, %v1172, 0
        %1179 = vmatprep.subr.mxu0 0.0
        %1180 = vmatpush1.msra.mxu0 %v1174
        %1181 = vmatprep.subr.mxu0 0.0
        %1182 = vmatpush1.msra.mxu0 0.0
        %1183 = vmatprep.subr.mxu0 0.0
        %1184 = vmatpush1.msra.mxu0 0.0
        %1185 = vmatprep.subr.mxu0 0.0
        %1186 = vmatpush1.msra.mxu0 0.0
        %1187 = vmatprep.subr.mxu0 0.0
        %1188 = vmatpush1.msra.mxu0 0.0
        %1189 = vmatprep.subr.mxu0 0.0
        %1190 = vmatpush1.msra.mxu0 0.0
        %1191 = vmatprep.subr.mxu0 0.0
        %1192 = vmatpush1.msra.mxu0 0.0
        %1193 = vmatprep.subr.mxu0 0.0
        %1194 = vmatpush1.msra.mxu0 0.0
        %1195 = vmatprep.subr.mxu0 0.0
        %1196 = vmatpush1.msra.mxu0 0.0
        %1197 = vmatprep.subr.mxu0 0.0
        %1198 = vmatpush1.msra.mxu0 0.0
        %1199 = vmatprep.subr.mxu0 0.0
        %1200 = vmatpush1.msra.mxu0 0.0
        %1201 = vmatprep.subr.mxu0 0.0
        %1202 = vmatpush1.msra.mxu0 0.0
        %1203 = vmatprep.subr.mxu0 0.0
        %1204 = vmatpush1.msra.mxu0 0.0
        %1205 = vmatprep.subr.mxu0 0.0
        %1206 = vmatpush1.msra.mxu0 0.0
        %1207 = vmatprep.subr.mxu0 0.0
        %1208 = vmatpush1.msra.mxu0 0.0
        %1209 = vmatprep.subr.mxu0 0.0
        %1210 = vmatpush1.msra.mxu0 0.0
        %1211 = vmatprep.subr.mxu0 0.0
        %1212 = vmatpush1.msra.mxu0 0.0
        %1213 = vmatprep.subr.mxu0 0.0
        %1214 = vmatpush1.msra.mxu0 0.0
        %1215 = vmatprep.subr.mxu0 0.0
        %1216 = vmatpush1.msra.mxu0 0.0
        %1217 = vmatprep.subr.mxu0 0.0
        %1218 = vmatpush1.msra.mxu0 0.0
        %1219 = vmatprep.subr.mxu0 0.0
        %1220 = vmatpush1.msra.mxu0 0.0
        %1221 = vmatprep.subr.mxu0 0.0
        %1222 = vmatpush1.msra.mxu0 0.0
        %1223 = vmatprep.subr.mxu0 0.0
        %1224 = vmatpush1.msra.mxu0 0.0
        %1225 = vmatprep.subr.mxu0 0.0
        %1226 = vmatpush1.msra.mxu0 0.0
        %1227 = vmatprep.subr.mxu0 0.0
        %1228 = vmatpush1.msra.mxu0 0.0
        %1229 = vmatprep.subr.mxu0 0.0
        %1230 = vmatpush1.msra.mxu0 0.0
        %1231 = vmatprep.subr.mxu0 0.0
        %1232 = vmatpush1.msra.mxu0 0.0
        %1233 = vmatprep.subr.mxu0 0.0
        %1234 = vmatpush1.msra.mxu0 0.0
        %1235 = vmatprep.subr.mxu0 0.0
        %1236 = vmatpush1.msra.mxu0 0.0
        %1237 = vmatprep.subr.mxu0 0.0
        %1238 = vmatpush1.msra.mxu0 0.0
        %1239 = vmatprep.subr.mxu0 0.0
        %1240 = vmatpush1.msra.mxu0 0.0
        %1241 = vmatprep.subr.mxu0 0.0
        %1242 = vmatpush1.msra.mxu0 0.0
        %1243 = vmatprep.mubr.f32.mxu0 0.0
        %1244 = vmatmul.mubr.f32.gmra.mrb[0].mxu0 %v1177
        %v1245 = vpop.f32.mrb[0].mxu0
        %v1246 = vadd.f32 0.0, %v1245
        %v1247 = vpop.f32.mrb[0].mxu0
        %1248 = vdwg.mxu0
        %v1249 = vadd.f32 %v1084, %v1246
        %1251 = vrot.lane.b32.xlu0 %v915, 8
        %v1252 = vpop.permute.xlu0 %1251
        %1255 = vrot.lane.b32.xlu0 %v1082, 16
        %v1256 = vpop.permute.xlu0 %1255
        %1259 = vrot.lane.b32.xlu0 %v1249, 24
        %v1260 = vpop.permute.xlu0 %1259
        %v1262 = vsel %vm585, %v747, %v1252
        %vm1263 = vcmask 130048
        %v1264 = vsel %vm1263, %v1262, %v1256
        %vm1265 = vcmask 195584
        %v1266 = vsel %vm1265, %v1264, %v1260
        %v1267 = vld [vmem:[#allocation13] sm:$0xff]
        %v1268 = vld [vmem:[#allocation13 + $0x8] sm:$0xff]
        %v1269 = vld [vmem:[#allocation13 + $0x10] sm:$0xff]
        %v1270 = vld [vmem:[#allocation13 + $0x18] sm:$0xff]
        %v1271 = vld [vmem:[#allocation14] sm:$0x1]
        %v1273 = vlaneseq
        %v1274 = vshrl.u32 %v1273, 7
        %v1275 = vsub.s32 0, %v1274
        %v1276 = vrot.slane %v1271, %v1275
        %v1279 = vsel %vm429, %v1266, 0
        %1281 = vmatprep.subr.mxu0 0.0
        %1282 = vmatpush1.msra.mxu0 %v1267
        %1283 = vmatprep.subr.mxu0 0.0
        %1284 = vmatpush1.msra.mxu0 %v1268
        %1285 = vmatprep.subr.mxu0 0.0
        %1286 = vmatpush1.msra.mxu0 %v1269
        %1287 = vmatprep.subr.mxu0 0.0
        %1288 = vmatpush1.msra.mxu0 %v1270
        %1289 = vmatprep.subr.mxu0 0.0
        %1290 = vmatpush1.msra.mxu0 0.0
        %1291 = vmatprep.subr.mxu0 0.0
        %1292 = vmatpush1.msra.mxu0 0.0
        %1293 = vmatprep.subr.mxu0 0.0
        %1294 = vmatpush1.msra.mxu0 0.0
        %1295 = vmatprep.subr.mxu0 0.0
        %1296 = vmatpush1.msra.mxu0 0.0
        %1297 = vmatprep.subr.mxu0 0.0
        %1298 = vmatpush1.msra.mxu0 0.0
        %1299 = vmatprep.subr.mxu0 0.0
        %1300 = vmatpush1.msra.mxu0 0.0
        %1301 = vmatprep.subr.mxu0 0.0
        %1302 = vmatpush1.msra.mxu0 0.0
        %1303 = vmatprep.subr.mxu0 0.0
        %1304 = vmatpush1.msra.mxu0 0.0
        %1305 = vmatprep.subr.mxu0 0.0
        %1306 = vmatpush1.msra.mxu0 0.0
        %1307 = vmatprep.subr.mxu0 0.0
        %1308 = vmatpush1.msra.mxu0 0.0
        %1309 = vmatprep.subr.mxu0 0.0
        %1310 = vmatpush1.msra.mxu0 0.0
        %1311 = vmatprep.subr.mxu0 0.0
        %1312 = vmatpush1.msra.mxu0 0.0
        %1313 = vmatprep.subr.mxu0 0.0
        %1314 = vmatpush1.msra.mxu0 0.0
        %1315 = vmatprep.subr.mxu0 0.0
        %1316 = vmatpush1.msra.mxu0 0.0
        %1317 = vmatprep.subr.mxu0 0.0
        %1318 = vmatpush1.msra.mxu0 0.0
        %1319 = vmatprep.subr.mxu0 0.0
        %1320 = vmatpush1.msra.mxu0 0.0
        %1321 = vmatprep.subr.mxu0 0.0
        %1322 = vmatpush1.msra.mxu0 0.0
        %1323 = vmatprep.subr.mxu0 0.0
        %1324 = vmatpush1.msra.mxu0 0.0
        %1325 = vmatprep.subr.mxu0 0.0
        %1326 = vmatpush1.msra.mxu0 0.0
        %1327 = vmatprep.subr.mxu0 0.0
        %1328 = vmatpush1.msra.mxu0 0.0
        %1329 = vmatprep.subr.mxu0 0.0
        %1330 = vmatpush1.msra.mxu0 0.0
        %1331 = vmatprep.subr.mxu0 0.0
        %1332 = vmatpush1.msra.mxu0 0.0
        %1333 = vmatprep.subr.mxu0 0.0
        %1334 = vmatpush1.msra.mxu0 0.0
        %1335 = vmatprep.subr.mxu0 0.0
        %1336 = vmatpush1.msra.mxu0 0.0
        %1337 = vmatprep.subr.mxu0 0.0
        %1338 = vmatpush1.msra.mxu0 0.0
        %1339 = vmatprep.subr.mxu0 0.0
        %1340 = vmatpush1.msra.mxu0 0.0
        %1341 = vmatprep.subr.mxu0 0.0
        %1342 = vmatpush1.msra.mxu0 0.0
        %1343 = vmatprep.subr.mxu0 0.0
        %1344 = vmatpush1.msra.mxu0 0.0
        %1345 = vmatprep.mubr.f32.mxu0 0.0
        %1346 = vmatmul.mubr.f32.gmra.mrb[0].mxu0 %v1279
        %v1347 = vpop.f32.mrb[0].mxu0
        %v1348 = vadd.f32 %v1276, %v1347
        %v1349 = vpop.f32.mrb[0].mxu0
        %1350 = vdwg.mxu0
        %v1351 = vmax.f32 %v1348, 0.0
        %v1352 = vadd.f32 %v1266, %v1351
        %vm1353 = vcmask 257024
        %1354 = vst.msk [vmem:[%s416] sm:$0xf] %vm1353, %v1352
        %s1355 = sand.u32 %s210, 1
        %s1356 = scalar_lea.sflag [#allocation4], %s1355
        %s1357 = sand.u32 %s210, 1
        %s1358 = smul.addr %s1357, 4
        %s1359 = scalar_lea.vmem [#allocation16], %s1358
        // Predicated region
        $region85: #{tpu_custom_call.1} parent=51 // pred_check
          %p1360 = pneg %p220
        $region86: #{tpu_custom_call.1} parent=51 // pred_check_branch
          %1362 = sbr.rel (%p1360) target = $region88
        $region87: #{tpu_custom_call.1} parent=51 // pred_region
          %s1364 = ssub.s32 64, 64
          %1365 = vsyncadd %s1356, %s1364
          %s1366 = smul.addr %s29, 64
          %s1367 = scalar_lea.hbm %s8, %s1366
          %s1369 = sshll.u32 %s1359, 4
          %s1370 = int_to_ptr.vmem [resolvable:$true] %s1369
          %1372 = dma.vmem_to_hbm [thread:$0]  %s1370, 64, %s1367, %s1356
        $region88: #{tpu_custom_call.1} parent=51 // pred_fallthru
          _
      $region52: #{tpu_custom_call.1} parent=5 // pred_fallthru
        _
      %p1373 = scmp.le.s32.totalorder 2, %s24
      // Predicated region
      $region89: #{tpu_custom_call.1} parent=5 // pred_check
        %p1374 = pneg %p1373
      $region90: #{tpu_custom_call.1} parent=5 // pred_check_branch
        %1376 = sbr.rel (%p1374) target = $region92
      $region91: #{tpu_custom_call.1} parent=5 // pred_region
        %s1377 = ssub.s32 %s24, 2
        // Predicated region
        $region93: #{tpu_custom_call.1} parent=91 // pred_check
          %p1378 = pneg %p226
        $region94: #{tpu_custom_call.1} parent=91 // pred_check_branch
          %1380 = sbr.rel (%p1378) target = $region96
        $region95: #{tpu_custom_call.1} parent=91 // pred_region
          %s1381 = sand.u32 %s211, 1
          %s1382 = scalar_lea.sflag [#allocation4], %s1381
          %s1383 = sand.u32 %s211, 1
          %s1384 = smul.addr %s1383, 4
          %s1385 = scalar_lea.vmem [#allocation16], %s1384
          %1386 = dma.done %s1382, 64
        $region96: #{tpu_custom_call.1} parent=91 // pred_fallthru
          _
      $region92: #{tpu_custom_call.1} parent=5 // pred_fallthru
        _
    $region6: #{tpu_custom_call.1} parent=1 // loop_footer
      %s28 = sadd.s32 1, %s24
    $region7: #{tpu_custom_call.1} parent=1 // loop_footer_branch
      %23 = sbr.rel target = $region3
    $region8: #{tpu_custom_call.1} parent=1 // loop_exit
      _
    %1387 = vsyncpa [#allocation3], 1
    %s1388 = scalar_lea.sflag [#allocation3], 1
    %1389 = vsyncpa %s1388, 1
    %1390 = vsyncpa [#allocation6], 1
    %s1391 = scalar_lea.sflag [#allocation6], 1
    %1392 = vsyncpa %s1391, 1
    %1393 = vsyncpa [#allocation9], 1
    %1394 = vsyncpa [#allocation12], 1
    %1395 = vsyncpa [#allocation15], 1
    %1396 = vsyncpa [#allocation4], 1
    %s1397 = scalar_lea.sflag [#allocation4], 1
    %1398 = vsyncpa %s1397, 1

</llo_original>
